<compile_context>
chip_gen: v5e
topology: v5e:2x2
jax: 0.10.0
libtpu: 0.0.40
codegen_flags: <defaults>
</compile_context>

<pallas_src>
import functools

import jax
import jax.numpy as jnp
from jax import lax
from jax.experimental import pallas as pl
from jax.experimental.pallas import tpu as pltpu

F32 = jnp.float32
BF16 = jnp.bfloat16
LANE = 128


def _vmem(n):
    return [pl.BlockSpec(memory_space=pltpu.MemorySpace.VMEM) for _ in range(n)]


def _round_up(n, m=LANE):
    return ((n + m - 1) // m) * m


def _pad2(a, rows, cols):
    return jnp.pad(a, ((0, rows - a.shape[0]), (0, cols - a.shape[1])))


def _mm(a, b):
    """MXU matmul: bf16 operands, f32 accumulation (astype is a no-op on bf16)."""
    return jnp.dot(a.astype(BF16), b.astype(BF16), preferred_element_type=F32)


def _mm_nt(a, b):
    """a @ b^T on the MXU (contract last dims of both), bf16 operands, f32 acc."""
    return lax.dot_general(a.astype(BF16), b.astype(BF16),
                           (((1,), (1,)), ((), ())),
                           preferred_element_type=F32)


# ---------------------------------------------------------------------------
# Fused kernel: encoder tanh-RNN -> (mu, logvar, z, h0) -> decoder tanh-RNN
#               with batched global dot-product attention over the
#               register-resident encoder context.
# ---------------------------------------------------------------------------
def vae_fused_kernel(S, T, B,
                     src_emb_ref, tgt_emb_ref, eps_ref, mask_ref,
                     enc_wih_ref, enc_whh_ref, enc_b_ref,
                     w_mulv_ref, b_mulv_ref, w_z_ref, b_z_ref,
                     dec_wih_ref, dec_whh_ref, dec_b_ref,
                     w_oh_ref, w_oc_ref, b_o_ref,
                     out_ref, attn_ref, hT_ref, mu_ref, lv_ref, z_ref):
    Hp = enc_whh_ref.shape[0]
    Lp = mu_ref.shape[1]

    # ----- encoder tanh-RNN ---------------------------------------------------
    # Input projection + bias for every timestep in one MXU call (hoisted).
    xp_enc = _mm(src_emb_ref[...], enc_wih_ref[...]) + enc_b_ref[...]   # (S*B, Hp) f32
    enc_whh = enc_whh_ref[...]                                          # f32, hoisted load

    h = jnp.zeros((B, Hp), F32)
    ctx_steps = []
    for s in range(S):                         # static -> fully unrolled
        h = jnp.tanh(xp_enc[s * B:(s + 1) * B, :]
                     + jnp.dot(h, enc_whh, preferred_element_type=F32))
        ctx_steps.append(h)
    ctx = jnp.concatenate(ctx_steps, axis=0)   # (S*B, Hp), row = s*B + b (vreg-resident)

    # ----- VAE head + init_decoder_state --------------------------------------
    mulv = _mm(h, w_mulv_ref[...]) + b_mulv_ref[...]                    # (B, 2*Lp)
    mu = mulv[:, :Lp]
    lv = mulv[:, Lp:]
    z = mu + jnp.exp(0.5 * lv) * eps_ref[...]
    h0 = jnp.tanh(h + _mm(z, w_z_ref[...]) + b_z_ref[...])
    mu_ref[...] = mu
    lv_ref[...] = lv
    z_ref[...] = z

    # ----- decoder tanh-RNN ----------------------------------------------------
    xp_dec = _mm(tgt_emb_ref[...], dec_wih_ref[...]) + dec_b_ref[...]   # (T*B, Hp)
    dec_whh = dec_whh_ref[...]
    h = h0
    hs_steps = []
    for t in range(T):                         # static -> fully unrolled
        h = jnp.tanh(xp_dec[t * B:(t + 1) * B, :]
                     + jnp.dot(h, dec_whh, preferred_element_type=F32))
        hs_steps.append(h)
    hs = jnp.concatenate(hs_steps, axis=0)     # (T*B, Hp), row = t*B + b
    hT_ref[...] = h

    # ----- batched attention + output projection (block-diag mask over B) -----
    scores = _mm_nt(hs, ctx) + mask_ref[...]                            # (T*B, S*B)
    scores = scores - jnp.max(scores, axis=-1, keepdims=True)
    p = jnp.exp(scores)
    alpha = p * pl.reciprocal(jnp.sum(p, axis=-1, keepdims=True), approx=True)
    attn_ref[...] = alpha

    c = _mm(alpha, ctx)                                                 # (T*B, Hp)
    out = jnp.tanh(_mm(hs, w_oh_ref[...]) + _mm(c, w_oc_ref[...]) + b_o_ref[...])
    out_ref[...] = out


# ---------------------------------------------------------------------------
# Parameter padding / stacking / bf16 pre-cast (done once, outside the kernel).
# ---------------------------------------------------------------------------
def prepare_params(p):
    V, E = p["emb_src"].shape
    H = p["enc_whh"].shape[0]
    L = p["w_mu"].shape[1]
    Ep, Hp, Lp = _round_up(E), _round_up(H), _round_up(L)
    bf = lambda a: a.astype(BF16)
    kp = {
        # bf16 feed-forward weights: halves the weight DMA, no in-kernel casts.
        "emb_src": bf(_pad2(p["emb_src"], V, Ep)),
        "emb_tgt": bf(_pad2(p["emb_tgt"], V, Ep)),
        "enc_wih": bf(_pad2(p["enc_wih"], Ep, Hp)),
        "dec_wih": bf(_pad2(p["dec_wih"], Ep, Hp)),
        "w_mulv":  bf(jnp.concatenate([_pad2(p["w_mu"], Hp, Lp),
                                       _pad2(p["w_lv"], Hp, Lp)], axis=1)),
        "w_z":     bf(_pad2(p["w_z"], Lp, Hp)),
        "w_oh":    bf(_pad2(p["w_oh"], Hp, Hp)),
        "w_oc":    bf(_pad2(p["w_oc"], Hp, Hp)),
        # recurrence weights stay f32 (precision over the serial unrolled steps).
        "enc_whh": _pad2(p["enc_whh"], Hp, Hp),
        "dec_whh": _pad2(p["dec_whh"], Hp, Hp),
        # biases stay f32.
        "enc_b":   _pad2(p["enc_b"], 1, Hp),
        "b_mulv":  jnp.concatenate([_pad2(p["b_mu"], 1, Lp),
                                    _pad2(p["b_lv"], 1, Lp)], axis=1),
        "b_z":     _pad2(p["b_z"], 1, Hp),
        "dec_b":   _pad2(p["dec_b"], 1, Hp),
        "b_o":     _pad2(p["b_o"], 1, Hp),
    }
    dims = {"E": E, "H": H, "L": L, "Ep": Ep, "Hp": Hp, "Lp": Lp}
    return kp, dims


# ---------------------------------------------------------------------------
# Full VAEModel.forward
# ---------------------------------------------------------------------------
def vae_model_forward(kp, dims, src, tgt, lengths, eps, sample=False):
    del sample  # both branches of the reference forward are identical
    S, B = src.shape
    H, L = dims["H"], dims["L"]
    Ep, Hp, Lp = dims["Ep"], dims["Hp"], dims["Lp"]

    tgt_in = tgt[:-1]
    T = tgt_in.shape[0]

    # Embedding lookups (XLA gathers) + flatten (time, batch) -> rows (free reshape).
    src_emb = kp["emb_src"][src].reshape(S * B, Ep)        # bf16, row = s*B + b
    tgt_emb = kp["emb_tgt"][tgt_in].reshape(T * B, Ep)     # bf16, row = t*B + b

    eps_p = jnp.pad(eps.astype(F32), ((0, 0), (0, Lp - L)))

    # Block-diagonal (per-batch) + source-length attention mask, time-major on
    # both axes: mask[t*B+b, s*B+b'] = 0 iff b == b' and s < lengths[b].
    valid = jnp.arange(S)[None, :] < lengths[:, None]                   # (B, S)
    eye = jnp.eye(B, dtype=bool)
    allowed = valid[:, :, None] & eye[:, None, :]                       # (B, S, B')
    mask_b = jnp.where(allowed, 0.0, -1e9).astype(F32).reshape(B, S * B)
    mask = jnp.broadcast_to(mask_b[None], (T, B, S * B)).reshape(T * B, S * B)

    kernel = functools.partial(vae_fused_kernel, S, T, B)
    out_p, attn_p, hT_p, mu_p, lv_p, z_p = pl.pallas_call(
        kernel,
        out_shape=(jax.ShapeDtypeStruct((T * B, Hp), F32),
                   jax.ShapeDtypeStruct((T * B, S * B), F32),
                   jax.ShapeDtypeStruct((B, Hp), F32),
                   jax.ShapeDtypeStruct((B, Lp), F32),
                   jax.ShapeDtypeStruct((B, Lp), F32),
                   jax.ShapeDtypeStruct((B, Lp), F32)),
        in_specs=_vmem(17),
        out_specs=tuple(_vmem(6)),
    )(src_emb, tgt_emb, eps_p, mask,
      kp["enc_wih"], kp["enc_whh"], kp["enc_b"],
      kp["w_mulv"], kp["b_mulv"], kp["w_z"], kp["b_z"],
      kp["dec_wih"], kp["dec_whh"], kp["dec_b"],
      kp["w_oh"], kp["w_oc"], kp["b_o"])

    out = out_p.reshape(T, B, Hp)[:, :, :H]                             # (T, B, H)
    a = attn_p.reshape(T, B, S, B)
    attns = jnp.transpose(jnp.diagonal(a, axis1=1, axis2=3), (0, 2, 1)) # (T, B, S)
    dec_hidden = hT_p[:, :H]
    return out, attns, dec_hidden, mu_p[:, :L], lv_p[:, :L], z_p[:, :L]


def make_params(key, vocab, emb, hidden, latent):
    ks = jax.random.split(key, 12)
    n = lambda k, s: (0.1 * jax.random.normal(k, s)).astype(F32)
    return {
        "emb_src": n(ks[0], (vocab, emb)),
        "emb_tgt": n(ks[1], (vocab, emb)),
        "enc_wih": n(ks[2], (emb, hidden)),
        "enc_whh": n(ks[3], (hidden, hidden)),
        "enc_b":   jnp.zeros((1, hidden), F32),
        "w_mu":    n(ks[4], (hidden, latent)),
        "b_mu":    jnp.zeros((1, latent), F32),
        "w_lv":    n(ks[5], (hidden, latent)),
        "b_lv":    jnp.zeros((1, latent), F32),
        "w_z":     n(ks[6], (latent, hidden)),
        "b_z":     jnp.zeros((1, hidden), F32),
        "dec_wih": n(ks[7], (emb, hidden)),
        "dec_whh": n(ks[8], (hidden, hidden)),
        "dec_b":   jnp.zeros((1, hidden), F32),
        "w_oh":    n(ks[9], (hidden, hidden)),
        "w_oc":    n(ks[10], (hidden, hidden)),
        "b_o":     jnp.zeros((1, hidden), F32),
    }


if __name__ == "__main__":
    SRC_LEN, TGT_LEN, BATCH = 8, 9, 2
    VOCAB, EMB, HIDDEN, LATENT = 50, 16, 32, 16

    key = jax.random.PRNGKey(0)
    k_src, k_tgt, k_eps, k_par = jax.random.split(key, 4)

    src = jax.random.randint(k_src, (SRC_LEN, BATCH), 0, VOCAB)   # (len x batch)
    tgt = jax.random.randint(k_tgt, (TGT_LEN, BATCH), 0, VOCAB)   # (len x batch)
    lengths = jnp.full((BATCH,), SRC_LEN, dtype=jnp.int32)        # all >= 1
    eps = jax.random.normal(k_eps, (BATCH, LATENT)).astype(F32)   # reparam noise

    params = make_params(k_par, VOCAB, EMB, HIDDEN, LATENT)
    kparams, dims = prepare_params(params)

    out, attns, dec_state, mu, logvar, z = vae_model_forward(
        kparams, dims, src, tgt, lengths, eps, sample=False)
    jax.block_until_ready((out, attns, dec_state, mu, logvar, z))

    assert out.shape == (TGT_LEN - 1, BATCH, HIDDEN)
    assert attns.shape == (TGT_LEN - 1, BATCH, SRC_LEN)
    assert dec_state.shape == (BATCH, HIDDEN)
    assert mu.shape == logvar.shape == z.shape == (BATCH, LATENT)
    assert bool(jnp.all(jnp.isfinite(out)))
    assert bool(jnp.all(jnp.isfinite(attns)))
    print("KERNEL_OK")
</pallas_src>

<mosaic_0001>
module attributes {stable_mosaic.version = 11 : i64} {
  func.func @vae_fused_kernel(%arg0: memref<16x128xbf16, #tpu.memory_space<vmem>>, %arg1: memref<16x128xbf16, #tpu.memory_space<vmem>>, %arg2: memref<2x128xf32, #tpu.memory_space<vmem>>, %arg3: memref<16x16xf32, #tpu.memory_space<vmem>>, %arg4: memref<128x128xbf16, #tpu.memory_space<vmem>>, %arg5: memref<128x128xf32, #tpu.memory_space<vmem>>, %arg6: memref<1x128xf32, #tpu.memory_space<vmem>>, %arg7: memref<128x256xbf16, #tpu.memory_space<vmem>>, %arg8: memref<1x256xf32, #tpu.memory_space<vmem>>, %arg9: memref<128x128xbf16, #tpu.memory_space<vmem>>, %arg10: memref<1x128xf32, #tpu.memory_space<vmem>>, %arg11: memref<128x128xbf16, #tpu.memory_space<vmem>>, %arg12: memref<128x128xf32, #tpu.memory_space<vmem>>, %arg13: memref<1x128xf32, #tpu.memory_space<vmem>>, %arg14: memref<128x128xbf16, #tpu.memory_space<vmem>>, %arg15: memref<128x128xbf16, #tpu.memory_space<vmem>>, %arg16: memref<1x128xf32, #tpu.memory_space<vmem>>, %arg17: memref<16x128xf32, #tpu.memory_space<vmem>>, %arg18: memref<16x16xf32, #tpu.memory_space<vmem>>, %arg19: memref<2x128xf32, #tpu.memory_space<vmem>>, %arg20: memref<2x128xf32, #tpu.memory_space<vmem>>, %arg21: memref<2x128xf32, #tpu.memory_space<vmem>>, %arg22: memref<2x128xf32, #tpu.memory_space<vmem>>) attributes {dimension_semantics = [], scalar_prefetch = 0 : i64, scratch_operands = 0 : i64, tpu.core_type = #tpu.core_type<tc>} {
    %c0 = arith.constant 0 : index
    %c0_0 = arith.constant 0 : index
    %0 = vector.load %arg0[%c0, %c0_0] : memref<16x128xbf16, #tpu.memory_space<vmem>>, vector<16x128xbf16>
    %c0_1 = arith.constant 0 : index
    %c0_2 = arith.constant 0 : index
    %1 = vector.load %arg4[%c0_1, %c0_2] : memref<128x128xbf16, #tpu.memory_space<vmem>>, vector<128x128xbf16>
    %cst = arith.constant dense<0.000000e+00> : vector<16x128xf32>
    %2 = tpu.matmul %0, %1, %cst {dimension_numbers = #tpu.dot_dimension_numbers<[1], [0], [0], [1], [0, 0, 1, 1], [], []>} : vector<16x128xbf16>, vector<128x128xbf16>, vector<16x128xf32> -> vector<16x128xf32>
    %c0_3 = arith.constant 0 : index
    %c0_4 = arith.constant 0 : index
    %3 = vector.load %arg6[%c0_3, %c0_4] : memref<1x128xf32, #tpu.memory_space<vmem>>, vector<1x128xf32>
    %4 = vector.broadcast %3 : vector<1x128xf32> to vector<16x128xf32>
    %5 = arith.addf %2, %4 : vector<16x128xf32>
    %c0_5 = arith.constant 0 : index
    %c0_6 = arith.constant 0 : index
    %6 = vector.load %arg5[%c0_5, %c0_6] : memref<128x128xf32, #tpu.memory_space<vmem>>, vector<128x128xf32>
    %cst_7 = arith.constant 0.000000e+00 : f32
    %7 = vector.broadcast %cst_7 : f32 to vector<2x128xf32>
    %8 = vector.extract_strided_slice %5 {offsets = [0, 0], sizes = [2, 128], strides = [1, 1]} : vector<16x128xf32> to vector<2x128xf32>
    %cst_8 = arith.constant dense<0.000000e+00> : vector<2x128xf32>
    %9 = tpu.matmul %7, %6, %cst_8 {dimension_numbers = #tpu.dot_dimension_numbers<[1], [0], [0], [1], [0, 0, 1, 1], [], []>} : vector<2x128xf32>, vector<128x128xf32>, vector<2x128xf32> -> vector<2x128xf32>
    %10 = arith.addf %8, %9 : vector<2x128xf32>
    %11 = math.tanh %10 : vector<2x128xf32>
    %12 = vector.extract_strided_slice %5 {offsets = [2, 0], sizes = [2, 128], strides = [1, 1]} : vector<16x128xf32> to vector<2x128xf32>
    %cst_9 = arith.constant dense<0.000000e+00> : vector<2x128xf32>
    %13 = tpu.matmul %11, %6, %cst_9 {dimension_numbers = #tpu.dot_dimension_numbers<[1], [0], [0], [1], [0, 0, 1, 1], [], []>} : vector<2x128xf32>, vector<128x128xf32>, vector<2x128xf32> -> vector<2x128xf32>
    %14 = arith.addf %12, %13 : vector<2x128xf32>
    %15 = math.tanh %14 : vector<2x128xf32>
    %16 = vector.extract_strided_slice %5 {offsets = [4, 0], sizes = [2, 128], strides = [1, 1]} : vector<16x128xf32> to vector<2x128xf32>
    %cst_10 = arith.constant dense<0.000000e+00> : vector<2x128xf32>
    %17 = tpu.matmul %15, %6, %cst_10 {dimension_numbers = #tpu.dot_dimension_numbers<[1], [0], [0], [1], [0, 0, 1, 1], [], []>} : vector<2x128xf32>, vector<128x128xf32>, vector<2x128xf32> -> vector<2x128xf32>
    %18 = arith.addf %16, %17 : vector<2x128xf32>
    %19 = math.tanh %18 : vector<2x128xf32>
    %20 = vector.extract_strided_slice %5 {offsets = [6, 0], sizes = [2, 128], strides = [1, 1]} : vector<16x128xf32> to vector<2x128xf32>
    %cst_11 = arith.constant dense<0.000000e+00> : vector<2x128xf32>
    %21 = tpu.matmul %19, %6, %cst_11 {dimension_numbers = #tpu.dot_dimension_numbers<[1], [0], [0], [1], [0, 0, 1, 1], [], []>} : vector<2x128xf32>, vector<128x128xf32>, vector<2x128xf32> -> vector<2x128xf32>
    %22 = arith.addf %20, %21 : vector<2x128xf32>
    %23 = math.tanh %22 : vector<2x128xf32>
    %24 = vector.extract_strided_slice %5 {offsets = [8, 0], sizes = [2, 128], strides = [1, 1]} : vector<16x128xf32> to vector<2x128xf32>
    %cst_12 = arith.constant dense<0.000000e+00> : vector<2x128xf32>
    %25 = tpu.matmul %23, %6, %cst_12 {dimension_numbers = #tpu.dot_dimension_numbers<[1], [0], [0], [1], [0, 0, 1, 1], [], []>} : vector<2x128xf32>, vector<128x128xf32>, vector<2x128xf32> -> vector<2x128xf32>
    %26 = arith.addf %24, %25 : vector<2x128xf32>
    %27 = math.tanh %26 : vector<2x128xf32>
    %28 = vector.extract_strided_slice %5 {offsets = [10, 0], sizes = [2, 128], strides = [1, 1]} : vector<16x128xf32> to vector<2x128xf32>
    %cst_13 = arith.constant dense<0.000000e+00> : vector<2x128xf32>
    %29 = tpu.matmul %27, %6, %cst_13 {dimension_numbers = #tpu.dot_dimension_numbers<[1], [0], [0], [1], [0, 0, 1, 1], [], []>} : vector<2x128xf32>, vector<128x128xf32>, vector<2x128xf32> -> vector<2x128xf32>
    %30 = arith.addf %28, %29 : vector<2x128xf32>
    %31 = math.tanh %30 : vector<2x128xf32>
    %32 = vector.extract_strided_slice %5 {offsets = [12, 0], sizes = [2, 128], strides = [1, 1]} : vector<16x128xf32> to vector<2x128xf32>
    %cst_14 = arith.constant dense<0.000000e+00> : vector<2x128xf32>
    %33 = tpu.matmul %31, %6, %cst_14 {dimension_numbers = #tpu.dot_dimension_numbers<[1], [0], [0], [1], [0, 0, 1, 1], [], []>} : vector<2x128xf32>, vector<128x128xf32>, vector<2x128xf32> -> vector<2x128xf32>
    %34 = arith.addf %32, %33 : vector<2x128xf32>
    %35 = math.tanh %34 : vector<2x128xf32>
    %36 = vector.extract_strided_slice %5 {offsets = [14, 0], sizes = [2, 128], strides = [1, 1]} : vector<16x128xf32> to vector<2x128xf32>
    %cst_15 = arith.constant dense<0.000000e+00> : vector<2x128xf32>
    %37 = tpu.matmul %35, %6, %cst_15 {dimension_numbers = #tpu.dot_dimension_numbers<[1], [0], [0], [1], [0, 0, 1, 1], [], []>} : vector<2x128xf32>, vector<128x128xf32>, vector<2x128xf32> -> vector<2x128xf32>
    %38 = arith.addf %36, %37 : vector<2x128xf32>
    %39 = math.tanh %38 : vector<2x128xf32>
    %40 = tpu.concatenate %11, %15, %19, %23, %27, %31, %35, %39 in 0 : vector<2x128xf32>, vector<2x128xf32>, vector<2x128xf32>, vector<2x128xf32>, vector<2x128xf32>, vector<2x128xf32>, vector<2x128xf32>, vector<2x128xf32> -> vector<16x128xf32>
    %c0_16 = arith.constant 0 : index
    %c0_17 = arith.constant 0 : index
    %41 = vector.load %arg7[%c0_16, %c0_17] : memref<128x256xbf16, #tpu.memory_space<vmem>>, vector<128x256xbf16>
    %42 = arith.truncf %39 : vector<2x128xf32> to vector<2x128xbf16>
    %cst_18 = arith.constant dense<0.000000e+00> : vector<2x256xf32>
    %43 = tpu.matmul %42, %41, %cst_18 {dimension_numbers = #tpu.dot_dimension_numbers<[1], [0], [0], [1], [0, 0, 1, 1], [], []>} : vector<2x128xbf16>, vector<128x256xbf16>, vector<2x256xf32> -> vector<2x256xf32>
    %c0_19 = arith.constant 0 : index
    %c0_20 = arith.constant 0 : index
    %44 = vector.load %arg8[%c0_19, %c0_20] : memref<1x256xf32, #tpu.memory_space<vmem>>, vector<1x256xf32>
    %45 = vector.broadcast %44 : vector<1x256xf32> to vector<2x256xf32>
    %46 = arith.addf %43, %45 : vector<2x256xf32>
    %47 = vector.extract_strided_slice %46 {offsets = [0, 0], sizes = [2, 128], strides = [1, 1]} : vector<2x256xf32> to vector<2x128xf32>
    %48 = vector.extract_strided_slice %46 {offsets = [0, 128], sizes = [2, 128], strides = [1, 1]} : vector<2x256xf32> to vector<2x128xf32>
    %cst_21 = arith.constant 5.000000e-01 : f32
    %49 = vector.broadcast %cst_21 : f32 to vector<2x128xf32>
    %50 = arith.mulf %49, %48 : vector<2x128xf32>
    %51 = math.exp %50 : vector<2x128xf32>
    %c0_22 = arith.constant 0 : index
    %c0_23 = arith.constant 0 : index
    %52 = vector.load %arg2[%c0_22, %c0_23] : memref<2x128xf32, #tpu.memory_space<vmem>>, vector<2x128xf32>
    %53 = arith.mulf %51, %52 : vector<2x128xf32>
    %54 = arith.addf %47, %53 : vector<2x128xf32>
    %c0_24 = arith.constant 0 : index
    %c0_25 = arith.constant 0 : index
    %55 = vector.load %arg9[%c0_24, %c0_25] : memref<128x128xbf16, #tpu.memory_space<vmem>>, vector<128x128xbf16>
    %56 = arith.truncf %54 : vector<2x128xf32> to vector<2x128xbf16>
    %cst_26 = arith.constant dense<0.000000e+00> : vector<2x128xf32>
    %57 = tpu.matmul %56, %55, %cst_26 {dimension_numbers = #tpu.dot_dimension_numbers<[1], [0], [0], [1], [0, 0, 1, 1], [], []>} : vector<2x128xbf16>, vector<128x128xbf16>, vector<2x128xf32> -> vector<2x128xf32>
    %58 = arith.addf %39, %57 : vector<2x128xf32>
    %c0_27 = arith.constant 0 : index
    %c0_28 = arith.constant 0 : index
    %59 = vector.load %arg10[%c0_27, %c0_28] : memref<1x128xf32, #tpu.memory_space<vmem>>, vector<1x128xf32>
    %60 = vector.broadcast %59 : vector<1x128xf32> to vector<2x128xf32>
    %61 = arith.addf %58, %60 : vector<2x128xf32>
    %62 = math.tanh %61 : vector<2x128xf32>
    %c0_29 = arith.constant 0 : index
    %c0_30 = arith.constant 0 : index
    %63 = vector.load %arg20[%c0_29, %c0_30] : memref<2x128xf32, #tpu.memory_space<vmem>>, vector<2x128xf32>
    tpu.vector_store %arg20[%c0_29, %c0_30], %47 {strides = array<i32>} : memref<2x128xf32, #tpu.memory_space<vmem>>, vector<2x128xf32>,
    %c0_31 = arith.constant 0 : index
    %c0_32 = arith.constant 0 : index
    %64 = vector.load %arg21[%c0_31, %c0_32] : memref<2x128xf32, #tpu.memory_space<vmem>>, vector<2x128xf32>
    tpu.vector_store %arg21[%c0_31, %c0_32], %48 {strides = array<i32>} : memref<2x128xf32, #tpu.memory_space<vmem>>, vector<2x128xf32>,
    %c0_33 = arith.constant 0 : index
    %c0_34 = arith.constant 0 : index
    %65 = vector.load %arg22[%c0_33, %c0_34] : memref<2x128xf32, #tpu.memory_space<vmem>>, vector<2x128xf32>
    tpu.vector_store %arg22[%c0_33, %c0_34], %54 {strides = array<i32>} : memref<2x128xf32, #tpu.memory_space<vmem>>, vector<2x128xf32>,
    %c0_35 = arith.constant 0 : index
    %c0_36 = arith.constant 0 : index
    %66 = vector.load %arg1[%c0_35, %c0_36] : memref<16x128xbf16, #tpu.memory_space<vmem>>, vector<16x128xbf16>
    %c0_37 = arith.constant 0 : index
    %c0_38 = arith.constant 0 : index
    %67 = vector.load %arg11[%c0_37, %c0_38] : memref<128x128xbf16, #tpu.memory_space<vmem>>, vector<128x128xbf16>
    %cst_39 = arith.constant dense<0.000000e+00> : vector<16x128xf32>
    %68 = tpu.matmul %66, %67, %cst_39 {dimension_numbers = #tpu.dot_dimension_numbers<[1], [0], [0], [1], [0, 0, 1, 1], [], []>} : vector<16x128xbf16>, vector<128x128xbf16>, vector<16x128xf32> -> vector<16x128xf32>
    %c0_40 = arith.constant 0 : index
    %c0_41 = arith.constant 0 : index
    %69 = vector.load %arg13[%c0_40, %c0_41] : memref<1x128xf32, #tpu.memory_space<vmem>>, vector<1x128xf32>
    %70 = vector.broadcast %69 : vector<1x128xf32> to vector<16x128xf32>
    %71 = arith.addf %68, %70 : vector<16x128xf32>
    %c0_42 = arith.constant 0 : index
    %c0_43 = arith.constant 0 : index
    %72 = vector.load %arg12[%c0_42, %c0_43] : memref<128x128xf32, #tpu.memory_space<vmem>>, vector<128x128xf32>
    %73 = vector.extract_strided_slice %71 {offsets = [0, 0], sizes = [2, 128], strides = [1, 1]} : vector<16x128xf32> to vector<2x128xf32>
    %cst_44 = arith.constant dense<0.000000e+00> : vector<2x128xf32>
    %74 = tpu.matmul %62, %72, %cst_44 {dimension_numbers = #tpu.dot_dimension_numbers<[1], [0], [0], [1], [0, 0, 1, 1], [], []>} : vector<2x128xf32>, vector<128x128xf32>, vector<2x128xf32> -> vector<2x128xf32>
    %75 = arith.addf %73, %74 : vector<2x128xf32>
    %76 = math.tanh %75 : vector<2x128xf32>
    %77 = vector.extract_strided_slice %71 {offsets = [2, 0], sizes = [2, 128], strides = [1, 1]} : vector<16x128xf32> to vector<2x128xf32>
    %cst_45 = arith.constant dense<0.000000e+00> : vector<2x128xf32>
    %78 = tpu.matmul %76, %72, %cst_45 {dimension_numbers = #tpu.dot_dimension_numbers<[1], [0], [0], [1], [0, 0, 1, 1], [], []>} : vector<2x128xf32>, vector<128x128xf32>, vector<2x128xf32> -> vector<2x128xf32>
    %79 = arith.addf %77, %78 : vector<2x128xf32>
    %80 = math.tanh %79 : vector<2x128xf32>
    %81 = vector.extract_strided_slice %71 {offsets = [4, 0], sizes = [2, 128], strides = [1, 1]} : vector<16x128xf32> to vector<2x128xf32>
    %cst_46 = arith.constant dense<0.000000e+00> : vector<2x128xf32>
    %82 = tpu.matmul %80, %72, %cst_46 {dimension_numbers = #tpu.dot_dimension_numbers<[1], [0], [0], [1], [0, 0, 1, 1], [], []>} : vector<2x128xf32>, vector<128x128xf32>, vector<2x128xf32> -> vector<2x128xf32>
    %83 = arith.addf %81, %82 : vector<2x128xf32>
    %84 = math.tanh %83 : vector<2x128xf32>
    %85 = vector.extract_strided_slice %71 {offsets = [6, 0], sizes = [2, 128], strides = [1, 1]} : vector<16x128xf32> to vector<2x128xf32>
    %cst_47 = arith.constant dense<0.000000e+00> : vector<2x128xf32>
    %86 = tpu.matmul %84, %72, %cst_47 {dimension_numbers = #tpu.dot_dimension_numbers<[1], [0], [0], [1], [0, 0, 1, 1], [], []>} : vector<2x128xf32>, vector<128x128xf32>, vector<2x128xf32> -> vector<2x128xf32>
    %87 = arith.addf %85, %86 : vector<2x128xf32>
    %88 = math.tanh %87 : vector<2x128xf32>
    %89 = vector.extract_strided_slice %71 {offsets = [8, 0], sizes = [2, 128], strides = [1, 1]} : vector<16x128xf32> to vector<2x128xf32>
    %cst_48 = arith.constant dense<0.000000e+00> : vector<2x128xf32>
    %90 = tpu.matmul %88, %72, %cst_48 {dimension_numbers = #tpu.dot_dimension_numbers<[1], [0], [0], [1], [0, 0, 1, 1], [], []>} : vector<2x128xf32>, vector<128x128xf32>, vector<2x128xf32> -> vector<2x128xf32>
    %91 = arith.addf %89, %90 : vector<2x128xf32>
    %92 = math.tanh %91 : vector<2x128xf32>
    %93 = vector.extract_strided_slice %71 {offsets = [10, 0], sizes = [2, 128], strides = [1, 1]} : vector<16x128xf32> to vector<2x128xf32>
    %cst_49 = arith.constant dense<0.000000e+00> : vector<2x128xf32>
    %94 = tpu.matmul %92, %72, %cst_49 {dimension_numbers = #tpu.dot_dimension_numbers<[1], [0], [0], [1], [0, 0, 1, 1], [], []>} : vector<2x128xf32>, vector<128x128xf32>, vector<2x128xf32> -> vector<2x128xf32>
    %95 = arith.addf %93, %94 : vector<2x128xf32>
    %96 = math.tanh %95 : vector<2x128xf32>
    %97 = vector.extract_strided_slice %71 {offsets = [12, 0], sizes = [2, 128], strides = [1, 1]} : vector<16x128xf32> to vector<2x128xf32>
    %cst_50 = arith.constant dense<0.000000e+00> : vector<2x128xf32>
    %98 = tpu.matmul %96, %72, %cst_50 {dimension_numbers = #tpu.dot_dimension_numbers<[1], [0], [0], [1], [0, 0, 1, 1], [], []>} : vector<2x128xf32>, vector<128x128xf32>, vector<2x128xf32> -> vector<2x128xf32>
    %99 = arith.addf %97, %98 : vector<2x128xf32>
    %100 = math.tanh %99 : vector<2x128xf32>
    %101 = vector.extract_strided_slice %71 {offsets = [14, 0], sizes = [2, 128], strides = [1, 1]} : vector<16x128xf32> to vector<2x128xf32>
    %cst_51 = arith.constant dense<0.000000e+00> : vector<2x128xf32>
    %102 = tpu.matmul %100, %72, %cst_51 {dimension_numbers = #tpu.dot_dimension_numbers<[1], [0], [0], [1], [0, 0, 1, 1], [], []>} : vector<2x128xf32>, vector<128x128xf32>, vector<2x128xf32> -> vector<2x128xf32>
    %103 = arith.addf %101, %102 : vector<2x128xf32>
    %104 = math.tanh %103 : vector<2x128xf32>
    %105 = tpu.concatenate %76, %80, %84, %88, %92, %96, %100, %104 in 0 : vector<2x128xf32>, vector<2x128xf32>, vector<2x128xf32>, vector<2x128xf32>, vector<2x128xf32>, vector<2x128xf32>, vector<2x128xf32>, vector<2x128xf32> -> vector<16x128xf32>
    %c0_52 = arith.constant 0 : index
    %c0_53 = arith.constant 0 : index
    %106 = vector.load %arg19[%c0_52, %c0_53] : memref<2x128xf32, #tpu.memory_space<vmem>>, vector<2x128xf32>
    tpu.vector_store %arg19[%c0_52, %c0_53], %104 {strides = array<i32>} : memref<2x128xf32, #tpu.memory_space<vmem>>, vector<2x128xf32>,
    %107 = arith.truncf %105 : vector<16x128xf32> to vector<16x128xbf16>
    %108 = arith.truncf %40 : vector<16x128xf32> to vector<16x128xbf16>
    %cst_54 = arith.constant dense<0.000000e+00> : vector<16x16xf32>
    %109 = tpu.matmul %107, %108, %cst_54 {dimension_numbers = #tpu.dot_dimension_numbers<[1], [1], [0], [0], [0, 0, 1, 0], [], []>} : vector<16x128xbf16>, vector<16x128xbf16>, vector<16x16xf32> -> vector<16x16xf32>
    %c0_55 = arith.constant 0 : index
    %c0_56 = arith.constant 0 : index
    %110 = vector.load %arg3[%c0_55, %c0_56] : memref<16x16xf32, #tpu.memory_space<vmem>>, vector<16x16xf32>
    %111 = arith.addf %109, %110 : vector<16x16xf32>
    %cst_57 = arith.constant dense<0xFF800000> : vector<16xf32>
    %112 = vector.multi_reduction <maximumf>, %111, %cst_57 [1] : vector<16x16xf32> to vector<16xf32>
    %113 = vector.shape_cast %112 : vector<16xf32> to vector<16x1xf32>
    %114 = vector.broadcast %113 : vector<16x1xf32> to vector<16x16xf32>
    %115 = arith.subf %111, %114 : vector<16x16xf32>
    %116 = math.exp %115 : vector<16x16xf32>
    %cst_58 = arith.constant dense<0.000000e+00> : vector<16xf32>
    %117 = vector.multi_reduction <add>, %116, %cst_58 [1] : vector<16x16xf32> to vector<16xf32>
    %118 = vector.shape_cast %117 : vector<16xf32> to vector<16x1xf32>
    %119 = tpu.reciprocal %118 {approx = true} : vector<16x1xf32> -> vector<16x1xf32>
    %120 = vector.broadcast %119 : vector<16x1xf32> to vector<16x16xf32>
    %121 = arith.mulf %116, %120 : vector<16x16xf32>
    %c0_59 = arith.constant 0 : index
    %c0_60 = arith.constant 0 : index
    %122 = vector.load %arg18[%c0_59, %c0_60] : memref<16x16xf32, #tpu.memory_space<vmem>>, vector<16x16xf32>
    tpu.vector_store %arg18[%c0_59, %c0_60], %121 {strides = array<i32>} : memref<16x16xf32, #tpu.memory_space<vmem>>, vector<16x16xf32>,
    %123 = arith.truncf %121 : vector<16x16xf32> to vector<16x16xbf16>
    %124 = arith.truncf %40 : vector<16x128xf32> to vector<16x128xbf16>
    %cst_61 = arith.constant dense<0.000000e+00> : vector<16x128xf32>
    %125 = tpu.matmul %123, %124, %cst_61 {dimension_numbers = #tpu.dot_dimension_numbers<[1], [0], [0], [1], [0, 0, 1, 1], [], []>} : vector<16x16xbf16>, vector<16x128xbf16>, vector<16x128xf32> -> vector<16x128xf32>
    %c0_62 = arith.constant 0 : index
    %c0_63 = arith.constant 0 : index
    %126 = vector.load %arg14[%c0_62, %c0_63] : memref<128x128xbf16, #tpu.memory_space<vmem>>, vector<128x128xbf16>
    %127 = arith.truncf %105 : vector<16x128xf32> to vector<16x128xbf16>
    %cst_64 = arith.constant dense<0.000000e+00> : vector<16x128xf32>
    %128 = tpu.matmul %127, %126, %cst_64 {dimension_numbers = #tpu.dot_dimension_numbers<[1], [0], [0], [1], [0, 0, 1, 1], [], []>} : vector<16x128xbf16>, vector<128x128xbf16>, vector<16x128xf32> -> vector<16x128xf32>
    %c0_65 = arith.constant 0 : index
    %c0_66 = arith.constant 0 : index
    %129 = vector.load %arg15[%c0_65, %c0_66] : memref<128x128xbf16, #tpu.memory_space<vmem>>, vector<128x128xbf16>
    %130 = arith.truncf %125 : vector<16x128xf32> to vector<16x128xbf16>
    %cst_67 = arith.constant dense<0.000000e+00> : vector<16x128xf32>
    %131 = tpu.matmul %130, %129, %cst_67 {dimension_numbers = #tpu.dot_dimension_numbers<[1], [0], [0], [1], [0, 0, 1, 1], [], []>} : vector<16x128xbf16>, vector<128x128xbf16>, vector<16x128xf32> -> vector<16x128xf32>
    %132 = arith.addf %128, %131 : vector<16x128xf32>
    %c0_68 = arith.constant 0 : index
    %c0_69 = arith.constant 0 : index
    %133 = vector.load %arg16[%c0_68, %c0_69] : memref<1x128xf32, #tpu.memory_space<vmem>>, vector<1x128xf32>
    %134 = vector.broadcast %133 : vector<1x128xf32> to vector<16x128xf32>
    %135 = arith.addf %132, %134 : vector<16x128xf32>
    %136 = math.tanh %135 : vector<16x128xf32>
    %c0_70 = arith.constant 0 : index
    %c0_71 = arith.constant 0 : index
    %137 = vector.load %arg17[%c0_70, %c0_71] : memref<16x128xf32, #tpu.memory_space<vmem>>, vector<16x128xf32>
    tpu.vector_store %arg17[%c0_70, %c0_71], %136 {strides = array<i32>} : memref<16x128xf32, #tpu.memory_space<vmem>>, vector<16x128xf32>,
    return
  }
}

</mosaic_0001>

<llo_original>
// kernel: tpu_custom_call.1
$region0: #{tpu_custom_call.1}
  #allocation0 [shape = 'u32[]', space=smem, size = 0x4, offset = 0x4, fixed_abs, tag = 'smem constant byte address 0x4 - core index']
  #allocation1 [shape = 'u32[72,128]{1,0:T(1,128)}', space=vmem, size = 0x9000, scoped, tag = 'internal scratch']
  %s0 = inlined_call_operand.hbm [shape: bf16[16,128], index: 0, kind: input, shape index: {}]
  %s1 = inlined_call_operand.hbm [shape: bf16[16,128], index: 1, kind: input, shape index: {}]
  %s2 = inlined_call_operand.hbm [shape: f32[2,128], index: 2, kind: input, shape index: {}]
  %s3 = inlined_call_operand.hbm [shape: f32[16,16], index: 3, kind: input, shape index: {}]
  %s4 = inlined_call_operand.hbm [shape: bf16[128,128], index: 4, kind: input, shape index: {}]
  %s5 = inlined_call_operand.hbm [shape: f32[128,128], index: 5, kind: input, shape index: {}]
  %s6 = inlined_call_operand.vmem [shape: f32[1,128], index: 6, kind: input, shape index: {}]
  %s7 = inlined_call_operand.hbm [shape: bf16[128,256], index: 7, kind: input, shape index: {}]
  %s8 = inlined_call_operand.vmem [shape: f32[1,256], index: 8, kind: input, shape index: {}]
  %s9 = inlined_call_operand.hbm [shape: bf16[128,128], index: 9, kind: input, shape index: {}]
  %s10 = inlined_call_operand.vmem [shape: f32[1,128], index: 10, kind: input, shape index: {}]
  %s11 = inlined_call_operand.hbm [shape: bf16[128,128], index: 11, kind: input, shape index: {}]
  %s12 = inlined_call_operand.hbm [shape: f32[128,128], index: 12, kind: input, shape index: {}]
  %s13 = inlined_call_operand.vmem [shape: f32[1,128], index: 13, kind: input, shape index: {}]
  %s14 = inlined_call_operand.hbm [shape: bf16[128,128], index: 14, kind: input, shape index: {}]
  %s15 = inlined_call_operand.hbm [shape: bf16[128,128], index: 15, kind: input, shape index: {}]
  %s16 = inlined_call_operand.vmem [shape: f32[1,128], index: 16, kind: input, shape index: {}]
  %s17 = inlined_call_operand.hbm [shape: f32[16,128], index: 17, kind: output, shape index: {0}]
  %s18 = inlined_call_operand.hbm [shape: f32[16,16], index: 18, kind: output, shape index: {1}]
  %s19 = inlined_call_operand.hbm [shape: f32[2,128], index: 19, kind: output, shape index: {2}]
  %s20 = inlined_call_operand.hbm [shape: f32[2,128], index: 20, kind: output, shape index: {3}]
  %s21 = inlined_call_operand.hbm [shape: f32[2,128], index: 21, kind: output, shape index: {4}]
  %s22 = inlined_call_operand.hbm [shape: f32[2,128], index: 22, kind: output, shape index: {5}]
  %23 = xla_tuple %s17, %s18, %s19, %s20, %s21, %s22
  %s24 = sld [smem:[#allocation0]]
  $region166: #{tpu_custom_call.1} parent=0
    _
  %s26 = ssub.s32 1, %s24
  %s27 = scalar_select 0, %s26, %s24
  $region1: #{tpu_custom_call.1} parent=0
    #allocation2 [shape = 'u8[4096]{0}', space=vmem, size = 0x1000, scoped, tag = 'input window, operand 0, single buffered']
    #allocation3 [shape = 's32[1]{0}', space=sflag, size = 0x4, scoped, tag = 'scoped memory for tpu_custom_call.1']
    #allocation4 [shape = 's32[1]{0}', space=sflag, size = 0x4, scoped, tag = 'scoped memory for tpu_custom_call.1']
    #allocation5 [shape = 'u8[4096]{0}', space=vmem, size = 0x1000, scoped, tag = 'input window, operand 1, single buffered']
    #allocation6 [shape = 's32[1]{0}', space=sflag, size = 0x4, scoped, tag = 'scoped memory for tpu_custom_call.1']
    #allocation7 [shape = 'u8[1024]{0}', space=vmem, size = 0x400, scoped, tag = 'input window, operand 2, single buffered']
    #allocation8 [shape = 'u8[8192]{0}', space=vmem, size = 0x2000, scoped, tag = 'input window, operand 3, single buffered']
    #allocation9 [shape = 's32[1]{0}', space=sflag, size = 0x4, scoped, tag = 'scoped memory for tpu_custom_call.1']
    #allocation10 [shape = 'u8[32768]{0}', space=vmem, size = 0x8000, scoped, tag = 'input window, operand 4, single buffered']
    #allocation11 [shape = 'u8[65536]{0}', space=vmem, size = 0x10000, scoped, tag = 'input window, operand 5, single buffered']
    #allocation12 [shape = 's32[1]{0}', space=sflag, size = 0x4, scoped, tag = 'scoped memory for tpu_custom_call.1']
    #allocation13 [shape = 'u8[65536]{0}', space=vmem, size = 0x10000, scoped, tag = 'input window, operand 7, single buffered']
    #allocation14 [shape = 'u8[32768]{0}', space=vmem, size = 0x8000, scoped, tag = 'input window, operand 9, single buffered']
    #allocation15 [shape = 's32[1]{0}', space=sflag, size = 0x4, scoped, tag = 'scoped memory for tpu_custom_call.1']
    #allocation16 [shape = 'u8[32768]{0}', space=vmem, size = 0x8000, scoped, tag = 'input window, operand 11, single buffered']
    #allocation17 [shape = 'u8[65536]{0}', space=vmem, size = 0x10000, scoped, tag = 'input window, operand 12, single buffered']
    #allocation18 [shape = 's32[1]{0}', space=sflag, size = 0x4, scoped, tag = 'scoped memory for tpu_custom_call.1']
    #allocation19 [shape = 'u8[32768]{0}', space=vmem, size = 0x8000, scoped, tag = 'input window, operand 14, single buffered']
    #allocation20 [shape = 'u8[32768]{0}', space=vmem, size = 0x8000, scoped, tag = 'input window, operand 15, single buffered']
    #allocation21 [shape = 's32[1]{0}', space=sflag, size = 0x4, scoped, tag = 'scoped memory for tpu_custom_call.1']
    #allocation22 [shape = 'u8[8192]{0}', space=vmem, size = 0x2000, scoped, tag = 'output window, operand 0, single buffered']
    #allocation23 [shape = 'u8[8192]{0}', space=vmem, size = 0x2000, scoped, tag = 'output window, operand 1, single buffered']
    #allocation24 [shape = 's32[1]{0}', space=sflag, size = 0x4, scoped, tag = 'scoped memory for tpu_custom_call.1']
    #allocation25 [shape = 'u8[1024]{0}', space=vmem, size = 0x400, scoped, tag = 'output window, operand 2, single buffered']
    #allocation26 [shape = 'u8[1024]{0}', space=vmem, size = 0x400, scoped, tag = 'output window, operand 3, single buffered']
    #allocation27 [shape = 's32[1]{0}', space=sflag, size = 0x4, scoped, tag = 'scoped memory for tpu_custom_call.1']
    #allocation28 [shape = 'u8[1024]{0}', space=vmem, size = 0x400, scoped, tag = 'output window, operand 4, single buffered']
    #allocation29 [shape = 'u8[1024]{0}', space=vmem, size = 0x400, scoped, tag = 'output window, operand 5, single buffered']
    #allocation30 [shape = 's32[1]{0}', space=sflag, size = 0x4, scoped, tag = 'scoped memory for tpu_custom_call.1']
    %28 = vsyncpa [#allocation3], 0
    %29 = vsyncpa [#allocation6], 0
    %30 = vsyncpa [#allocation9], 0
    %31 = vsyncpa [#allocation12], 0
    %32 = vsyncpa [#allocation15], 0
    %33 = vsyncpa [#allocation18], 0
    %34 = vsyncpa [#allocation21], 0
    %35 = vsyncpa [#allocation4], 0
    %36 = vsyncpa [#allocation24], 0
    %37 = vsyncpa [#allocation27], 0
    %38 = vsyncpa [#allocation30], 0
    // Predicated region
    $region2: #{tpu_custom_call.1} parent=1 // pred_check
      _
    $region3: #{tpu_custom_call.1} parent=1 // pred_check_branch
      %40 = sbr.rel (0) target = $region5
    $region4: #{tpu_custom_call.1} parent=1 // pred_region
      %42 = vsyncadd [#allocation3], 0
      %s43 = sshll.u32 %s0, 4
      %s44 = int_to_ptr.hbm [resolvable:$true] %s43
      %s45 = sshll.u32 [#allocation2], 4
      %s46 = int_to_ptr.vmem [resolvable:$true] %s45
      %51 = dma.hbm_to_vmem [thread:$0]  %s44, 128, %s46, [#allocation3], 64, 64, 4
    $region5: #{tpu_custom_call.1} parent=1 // pred_fallthru
      _
    // Predicated region
    $region6: #{tpu_custom_call.1} parent=1 // pred_check
      _
    $region7: #{tpu_custom_call.1} parent=1 // pred_check_branch
      %53 = sbr.rel (0) target = $region9
    $region8: #{tpu_custom_call.1} parent=1 // pred_region
      %55 = vsyncadd [#allocation6], 0
      %s56 = sshll.u32 %s1, 4
      %s57 = int_to_ptr.hbm [resolvable:$true] %s56
      %s58 = sshll.u32 [#allocation5], 4
      %s59 = int_to_ptr.vmem [resolvable:$true] %s58
      %64 = dma.hbm_to_vmem [thread:$0]  %s57, 128, %s59, [#allocation6], 64, 64, 4
    $region9: #{tpu_custom_call.1} parent=1 // pred_fallthru
      _
    // Predicated region
    $region10: #{tpu_custom_call.1} parent=1 // pred_check
      _
    $region11: #{tpu_custom_call.1} parent=1 // pred_check_branch
      %66 = sbr.rel (0) target = $region13
    $region12: #{tpu_custom_call.1} parent=1 // pred_region
      %68 = vsyncadd [#allocation6], 0
      %s70 = sshll.u32 %s2, 4
      %s71 = int_to_ptr.hbm [resolvable:$true] %s70
      %s72 = sshll.u32 [#allocation7], 4
      %s73 = int_to_ptr.vmem [resolvable:$true] %s72
      %75 = dma.hbm_to_vmem [thread:$0]  %s71, 32, %s73, [#allocation6]
    $region13: #{tpu_custom_call.1} parent=1 // pred_fallthru
      _
    // Predicated region
    $region14: #{tpu_custom_call.1} parent=1 // pred_check
      _
    $region15: #{tpu_custom_call.1} parent=1 // pred_check_branch
      %77 = sbr.rel (0) target = $region17
    $region16: #{tpu_custom_call.1} parent=1 // pred_region
      %79 = vsyncadd [#allocation9], 0
      %s80 = sshll.u32 %s3, 4
      %s81 = int_to_ptr.hbm [resolvable:$true] %s80
      %s82 = sshll.u32 [#allocation8], 4
      %s83 = int_to_ptr.vmem [resolvable:$true] %s82
      %88 = dma.hbm_to_vmem [thread:$0]  %s81, 256, %s83, [#allocation9], 128, 128, 8
    $region17: #{tpu_custom_call.1} parent=1 // pred_fallthru
      _
    // Predicated region
    $region18: #{tpu_custom_call.1} parent=1 // pred_check
      _
    $region19: #{tpu_custom_call.1} parent=1 // pred_check_branch
      %90 = sbr.rel (0) target = $region21
    $region20: #{tpu_custom_call.1} parent=1 // pred_region
      %92 = vsyncadd [#allocation9], 0
      %s93 = sshll.u32 %s4, 4
      %s94 = int_to_ptr.hbm [resolvable:$true] %s93
      %s95 = sshll.u32 [#allocation10], 4
      %s96 = int_to_ptr.vmem [resolvable:$true] %s95
      %101 = dma.hbm_to_vmem [thread:$0]  %s94, 1024, %s96, [#allocation9], 64, 64, 4
    $region21: #{tpu_custom_call.1} parent=1 // pred_fallthru
      _
    // Predicated region
    $region22: #{tpu_custom_call.1} parent=1 // pred_check
      _
    $region23: #{tpu_custom_call.1} parent=1 // pred_check_branch
      %103 = sbr.rel (0) target = $region25
    $region24: #{tpu_custom_call.1} parent=1 // pred_region
      %105 = vsyncadd [#allocation12], 0
      %s106 = sshll.u32 %s5, 4
      %s107 = int_to_ptr.hbm [resolvable:$true] %s106
      %s108 = sshll.u32 [#allocation11], 4
      %s109 = int_to_ptr.vmem [resolvable:$true] %s108
      %114 = dma.hbm_to_vmem [thread:$0]  %s107, 2048, %s109, [#allocation12], 128, 128, 8
    $region25: #{tpu_custom_call.1} parent=1 // pred_fallthru
      _
    // Predicated region
    $region26: #{tpu_custom_call.1} parent=1 // pred_check
      _
    $region27: #{tpu_custom_call.1} parent=1 // pred_check_branch
      %116 = sbr.rel (0) target = $region29
    $region28: #{tpu_custom_call.1} parent=1 // pred_region
      _
    $region29: #{tpu_custom_call.1} parent=1 // pred_fallthru
      _
    // Predicated region
    $region30: #{tpu_custom_call.1} parent=1 // pred_check
      _
    $region31: #{tpu_custom_call.1} parent=1 // pred_check_branch
      %118 = sbr.rel (0) target = $region33
    $region32: #{tpu_custom_call.1} parent=1 // pred_region
      %120 = vsyncadd [#allocation12], 0
      %s121 = sshll.u32 %s7, 4
      %s122 = int_to_ptr.hbm [resolvable:$true] %s121
      %s123 = sshll.u32 [#allocation13], 4
      %s124 = int_to_ptr.vmem [resolvable:$true] %s123
      %129 = dma.hbm_to_vmem [thread:$0]  %s122, 2048, %s124, [#allocation12], 128, 128, 8
    $region33: #{tpu_custom_call.1} parent=1 // pred_fallthru
      _
    // Predicated region
    $region34: #{tpu_custom_call.1} parent=1 // pred_check
      _
    $region35: #{tpu_custom_call.1} parent=1 // pred_check_branch
      %131 = sbr.rel (0) target = $region37
    $region36: #{tpu_custom_call.1} parent=1 // pred_region
      _
    $region37: #{tpu_custom_call.1} parent=1 // pred_fallthru
      _
    // Predicated region
    $region38: #{tpu_custom_call.1} parent=1 // pred_check
      _
    $region39: #{tpu_custom_call.1} parent=1 // pred_check_branch
      %133 = sbr.rel (0) target = $region41
    $region40: #{tpu_custom_call.1} parent=1 // pred_region
      %135 = vsyncadd [#allocation15], 0
      %s136 = sshll.u32 %s9, 4
      %s137 = int_to_ptr.hbm [resolvable:$true] %s136
      %s138 = sshll.u32 [#allocation14], 4
      %s139 = int_to_ptr.vmem [resolvable:$true] %s138
      %144 = dma.hbm_to_vmem [thread:$0]  %s137, 1024, %s139, [#allocation15], 64, 64, 4
    $region41: #{tpu_custom_call.1} parent=1 // pred_fallthru
      _
    // Predicated region
    $region42: #{tpu_custom_call.1} parent=1 // pred_check
      _
    $region43: #{tpu_custom_call.1} parent=1 // pred_check_branch
      %146 = sbr.rel (0) target = $region45
    $region44: #{tpu_custom_call.1} parent=1 // pred_region
      _
    $region45: #{tpu_custom_call.1} parent=1 // pred_fallthru
      _
    // Predicated region
    $region46: #{tpu_custom_call.1} parent=1 // pred_check
      _
    $region47: #{tpu_custom_call.1} parent=1 // pred_check_branch
      %148 = sbr.rel (0) target = $region49
    $region48: #{tpu_custom_call.1} parent=1 // pred_region
      %150 = vsyncadd [#allocation15], 0
      %s151 = sshll.u32 %s11, 4
      %s152 = int_to_ptr.hbm [resolvable:$true] %s151
      %s153 = sshll.u32 [#allocation16], 4
      %s154 = int_to_ptr.vmem [resolvable:$true] %s153
      %159 = dma.hbm_to_vmem [thread:$0]  %s152, 1024, %s154, [#allocation15], 64, 64, 4
    $region49: #{tpu_custom_call.1} parent=1 // pred_fallthru
      _
    // Predicated region
    $region50: #{tpu_custom_call.1} parent=1 // pred_check
      _
    $region51: #{tpu_custom_call.1} parent=1 // pred_check_branch
      %161 = sbr.rel (0) target = $region53
    $region52: #{tpu_custom_call.1} parent=1 // pred_region
      %163 = vsyncadd [#allocation18], 0
      %s164 = sshll.u32 %s12, 4
      %s165 = int_to_ptr.hbm [resolvable:$true] %s164
      %s166 = sshll.u32 [#allocation17], 4
      %s167 = int_to_ptr.vmem [resolvable:$true] %s166
      %172 = dma.hbm_to_vmem [thread:$0]  %s165, 2048, %s167, [#allocation18], 128, 128, 8
    $region53: #{tpu_custom_call.1} parent=1 // pred_fallthru
      _
    // Predicated region
    $region54: #{tpu_custom_call.1} parent=1 // pred_check
      _
    $region55: #{tpu_custom_call.1} parent=1 // pred_check_branch
      %174 = sbr.rel (0) target = $region57
    $region56: #{tpu_custom_call.1} parent=1 // pred_region
      _
    $region57: #{tpu_custom_call.1} parent=1 // pred_fallthru
      _
    // Predicated region
    $region58: #{tpu_custom_call.1} parent=1 // pred_check
      _
    $region59: #{tpu_custom_call.1} parent=1 // pred_check_branch
      %176 = sbr.rel (0) target = $region61
    $region60: #{tpu_custom_call.1} parent=1 // pred_region
      %178 = vsyncadd [#allocation18], 0
      %s179 = sshll.u32 %s14, 4
      %s180 = int_to_ptr.hbm [resolvable:$true] %s179
      %s181 = sshll.u32 [#allocation19], 4
      %s182 = int_to_ptr.vmem [resolvable:$true] %s181
      %187 = dma.hbm_to_vmem [thread:$0]  %s180, 1024, %s182, [#allocation18], 64, 64, 4
    $region61: #{tpu_custom_call.1} parent=1 // pred_fallthru
      _
    // Predicated region
    $region62: #{tpu_custom_call.1} parent=1 // pred_check
      _
    $region63: #{tpu_custom_call.1} parent=1 // pred_check_branch
      %189 = sbr.rel (0) target = $region65
    $region64: #{tpu_custom_call.1} parent=1 // pred_region
      %191 = vsyncadd [#allocation21], 0
      %s192 = sshll.u32 %s15, 4
      %s193 = int_to_ptr.hbm [resolvable:$true] %s192
      %s194 = sshll.u32 [#allocation20], 4
      %s195 = int_to_ptr.vmem [resolvable:$true] %s194
      %200 = dma.hbm_to_vmem [thread:$0]  %s193, 1024, %s195, [#allocation21], 64, 64, 4
    $region65: #{tpu_custom_call.1} parent=1 // pred_fallthru
      _
    // Predicated region
    $region66: #{tpu_custom_call.1} parent=1 // pred_check
      _
    $region67: #{tpu_custom_call.1} parent=1 // pred_check_branch
      %202 = sbr.rel (0) target = $region69
    $region68: #{tpu_custom_call.1} parent=1 // pred_region
      _
    $region69: #{tpu_custom_call.1} parent=1 // pred_fallthru
      _
    // Predicated region
    $region70: #{tpu_custom_call.1} parent=1 // pred_check
      _
    $region71: #{tpu_custom_call.1} parent=1 // pred_check_branch
      %204 = sbr.rel (0) target = $region73
    $region72: #{tpu_custom_call.1} parent=1 // pred_region
      %206 = dma.done [#allocation3], 128
    $region73: #{tpu_custom_call.1} parent=1 // pred_fallthru
      _
    // Predicated region
    $region74: #{tpu_custom_call.1} parent=1 // pred_check
      _
    $region75: #{tpu_custom_call.1} parent=1 // pred_check_branch
      %208 = sbr.rel (0) target = $region77
    $region76: #{tpu_custom_call.1} parent=1 // pred_region
      %210 = dma.done [#allocation6], 128
    $region77: #{tpu_custom_call.1} parent=1 // pred_fallthru
      _
    // Predicated region
    $region78: #{tpu_custom_call.1} parent=1 // pred_check
      _
    $region79: #{tpu_custom_call.1} parent=1 // pred_check_branch
      %212 = sbr.rel (0) target = $region81
    $region80: #{tpu_custom_call.1} parent=1 // pred_region
      %214 = dma.done [#allocation6], 32
    $region81: #{tpu_custom_call.1} parent=1 // pred_fallthru
      _
    // Predicated region
    $region82: #{tpu_custom_call.1} parent=1 // pred_check
      _
    $region83: #{tpu_custom_call.1} parent=1 // pred_check_branch
      %216 = sbr.rel (0) target = $region85
    $region84: #{tpu_custom_call.1} parent=1 // pred_region
      %218 = dma.done [#allocation9], 256
    $region85: #{tpu_custom_call.1} parent=1 // pred_fallthru
      _
    // Predicated region
    $region86: #{tpu_custom_call.1} parent=1 // pred_check
      _
    $region87: #{tpu_custom_call.1} parent=1 // pred_check_branch
      %220 = sbr.rel (0) target = $region89
    $region88: #{tpu_custom_call.1} parent=1 // pred_region
      %222 = dma.done [#allocation9], 1024
    $region89: #{tpu_custom_call.1} parent=1 // pred_fallthru
      _
    // Predicated region
    $region90: #{tpu_custom_call.1} parent=1 // pred_check
      _
    $region91: #{tpu_custom_call.1} parent=1 // pred_check_branch
      %224 = sbr.rel (0) target = $region93
    $region92: #{tpu_custom_call.1} parent=1 // pred_region
      %226 = dma.done [#allocation12], 2048
    $region93: #{tpu_custom_call.1} parent=1 // pred_fallthru
      _
    // Predicated region
    $region94: #{tpu_custom_call.1} parent=1 // pred_check
      _
    $region95: #{tpu_custom_call.1} parent=1 // pred_check_branch
      %228 = sbr.rel (0) target = $region97
    $region96: #{tpu_custom_call.1} parent=1 // pred_region
      %230 = dma.done [#allocation12], 2048
    $region97: #{tpu_custom_call.1} parent=1 // pred_fallthru
      _
    // Predicated region
    $region98: #{tpu_custom_call.1} parent=1 // pred_check
      _
    $region99: #{tpu_custom_call.1} parent=1 // pred_check_branch
      %232 = sbr.rel (0) target = $region101
    $region100: #{tpu_custom_call.1} parent=1 // pred_region
      %234 = dma.done [#allocation15], 1024
    $region101: #{tpu_custom_call.1} parent=1 // pred_fallthru
      _
    // Predicated region
    $region102: #{tpu_custom_call.1} parent=1 // pred_check
      _
    $region103: #{tpu_custom_call.1} parent=1 // pred_check_branch
      %236 = sbr.rel (0) target = $region105
    $region104: #{tpu_custom_call.1} parent=1 // pred_region
      %238 = dma.done [#allocation15], 1024
    $region105: #{tpu_custom_call.1} parent=1 // pred_fallthru
      _
    // Predicated region
    $region106: #{tpu_custom_call.1} parent=1 // pred_check
      _
    $region107: #{tpu_custom_call.1} parent=1 // pred_check_branch
      %240 = sbr.rel (0) target = $region109
    $region108: #{tpu_custom_call.1} parent=1 // pred_region
      %242 = dma.done [#allocation18], 2048
    $region109: #{tpu_custom_call.1} parent=1 // pred_fallthru
      _
    // Predicated region
    $region110: #{tpu_custom_call.1} parent=1 // pred_check
      _
    $region111: #{tpu_custom_call.1} parent=1 // pred_check_branch
      %244 = sbr.rel (0) target = $region113
    $region112: #{tpu_custom_call.1} parent=1 // pred_region
      %246 = dma.done [#allocation18], 1024
    $region113: #{tpu_custom_call.1} parent=1 // pred_fallthru
      _
    // Predicated region
    $region114: #{tpu_custom_call.1} parent=1 // pred_check
      _
    $region115: #{tpu_custom_call.1} parent=1 // pred_check_branch
      %248 = sbr.rel (0) target = $region117
    $region116: #{tpu_custom_call.1} parent=1 // pred_region
      %250 = dma.done [#allocation21], 1024
    $region117: #{tpu_custom_call.1} parent=1 // pred_fallthru
      _
    %v252 = vld [vmem:[#allocation2] sm:$0xf]
    %v253 = vld [vmem:[#allocation2 + $0x4] sm:$0xf]
    %v254 = vld [vmem:[#allocation10] sm:$0xf]
    %v255 = vld [vmem:[#allocation10 + $0x4] sm:$0xf]
    %v256 = vld [vmem:[#allocation10 + $0x8] sm:$0xf]
    %v257 = vld [vmem:[#allocation10 + $0xc] sm:$0xf]
    %v258 = vld [vmem:[#allocation10 + $0x10] sm:$0xf]
    %v259 = vld [vmem:[#allocation10 + $0x14] sm:$0xf]
    %v260 = vld [vmem:[#allocation10 + $0x18] sm:$0xf]
    %v261 = vld [vmem:[#allocation10 + $0x1c] sm:$0xf]
    %v262 = vld [vmem:[#allocation10 + $0x20] sm:$0xf]
    %v263 = vld [vmem:[#allocation10 + $0x24] sm:$0xf]
    %v264 = vld [vmem:[#allocation10 + $0x28] sm:$0xf]
    %v265 = vld [vmem:[#allocation10 + $0x2c] sm:$0xf]
    %v266 = vld [vmem:[#allocation10 + $0x30] sm:$0xf]
    %v267 = vld [vmem:[#allocation10 + $0x34] sm:$0xf]
    %v268 = vld [vmem:[#allocation10 + $0x38] sm:$0xf]
    %v269 = vld [vmem:[#allocation10 + $0x3c] sm:$0xf]
    %v270 = vld [vmem:[%s6] sm:$0x1]
    %v272 = vperm.slane %v270, 0
    %v276 = vunpack.c.l.b16 %v252
    %v277 = vunpack.c.l.b16 %v253
    %v278 = vpack.c.b16 %v277, %v276
    %v296 = vunpack.c.l.b16 %v254
    %v297 = vunpack.c.l.b16 %v255
    %v298 = vunpack.c.l.b16 %v256
    %v299 = vunpack.c.l.b16 %v257
    %v300 = vunpack.c.l.b16 %v258
    %v301 = vunpack.c.l.b16 %v259
    %v302 = vunpack.c.l.b16 %v260
    %v303 = vunpack.c.l.b16 %v261
    %v304 = vunpack.c.l.b16 %v262
    %v305 = vunpack.c.l.b16 %v263
    %v306 = vunpack.c.l.b16 %v264
    %v307 = vunpack.c.l.b16 %v265
    %v308 = vunpack.c.l.b16 %v266
    %v309 = vunpack.c.l.b16 %v267
    %v310 = vunpack.c.l.b16 %v268
    %v311 = vunpack.c.l.b16 %v269
    %v312 = vpack.c.b16 %v297, %v296
    %v313 = vpack.c.b16 %v299, %v298
    %v314 = vpack.c.b16 %v301, %v300
    %v315 = vpack.c.b16 %v303, %v302
    %v316 = vpack.c.b16 %v305, %v304
    %v317 = vpack.c.b16 %v307, %v306
    %v318 = vpack.c.b16 %v309, %v308
    %v319 = vpack.c.b16 %v311, %v310
    %328 = vmatpush.bf16.msra.mxu0 %v319
    %329 = vmatpush.bf16.msra.mxu0 %v318
    %330 = vmatpush.bf16.msra.mxu0 %v317
    %331 = vmatpush.bf16.msra.mxu0 %v316
    %332 = vmatpush.bf16.msra.mxu0 %v315
    %333 = vmatpush.bf16.msra.mxu0 %v314
    %334 = vmatpush.bf16.msra.mxu0 %v313
    %335 = vmatpush.bf16.msra.mxu0 %v312
    %336 = vmatmul.bf16.gmra.mxu0 %v278
    %v337 = vpop.f32.mrf.mxu0
    %v338 = vadd.f32 %v272, %v337
    %v339 = vpop.f32.mrf.mxu0
    %v340 = vadd.f32 %v272, %v339
    %341 = vdwg.mxu0
    %v342 = vld [vmem:[#allocation11] sm:$0xff]
    %v343 = vld [vmem:[#allocation11 + $0x8] sm:$0xff]
    %v344 = vld [vmem:[#allocation11 + $0x10] sm:$0xff]
    %v345 = vld [vmem:[#allocation11 + $0x18] sm:$0xff]
    %v346 = vld [vmem:[#allocation11 + $0x20] sm:$0xff]
    %v347 = vld [vmem:[#allocation11 + $0x28] sm:$0xff]
    %v348 = vld [vmem:[#allocation11 + $0x30] sm:$0xff]
    %v349 = vld [vmem:[#allocation11 + $0x38] sm:$0xff]
    %v350 = vld [vmem:[#allocation11 + $0x40] sm:$0xff]
    %v351 = vld [vmem:[#allocation11 + $0x48] sm:$0xff]
    %v352 = vld [vmem:[#allocation11 + $0x50] sm:$0xff]
    %v353 = vld [vmem:[#allocation11 + $0x58] sm:$0xff]
    %v354 = vld [vmem:[#allocation11 + $0x60] sm:$0xff]
    %v355 = vld [vmem:[#allocation11 + $0x68] sm:$0xff]
    %v356 = vld [vmem:[#allocation11 + $0x70] sm:$0xff]
    %v357 = vld [vmem:[#allocation11 + $0x78] sm:$0xff]
    %358 = vmatpush.msra.mxu0 %v357
    %359 = vmatpush.msra.mxu0 %v356
    %360 = vmatpush.msra.mxu0 %v355
    %361 = vmatpush.msra.mxu0 %v354
    %362 = vmatpush.msra.mxu0 %v353
    %363 = vmatpush.msra.mxu0 %v352
    %364 = vmatpush.msra.mxu0 %v351
    %365 = vmatpush.msra.mxu0 %v350
    %366 = vmatpush.msra.mxu0 %v349
    %367 = vmatpush.msra.mxu0 %v348
    %368 = vmatpush.msra.mxu0 %v347
    %369 = vmatpush.msra.mxu0 %v346
    %370 = vmatpush.msra.mxu0 %v345
    %371 = vmatpush.msra.mxu0 %v344
    %372 = vmatpush.msra.mxu0 %v343
    %373 = vmatpush.msra.mxu0 %v342
    %374 = vmatmul.f32.gmra.mxu0 0.0
    %v375 = vpop.f32.mrf.mxu0
    %v376 = vadd.f32 0.0, %v375
    %377 = vdwg.mxu0
    %v378 = vadd.f32 %v338, %v376
    %v379 = vtanh.pop %v378
    %380 = vmatpush.msra.mxu0 %v357
    %381 = vmatpush.msra.mxu0 %v356
    %382 = vmatpush.msra.mxu0 %v355
    %383 = vmatpush.msra.mxu0 %v354
    %384 = vmatpush.msra.mxu0 %v353
    %385 = vmatpush.msra.mxu0 %v352
    %386 = vmatpush.msra.mxu0 %v351
    %387 = vmatpush.msra.mxu0 %v350
    %388 = vmatpush.msra.mxu0 %v349
    %389 = vmatpush.msra.mxu0 %v348
    %390 = vmatpush.msra.mxu0 %v347
    %391 = vmatpush.msra.mxu0 %v346
    %392 = vmatpush.msra.mxu0 %v345
    %393 = vmatpush.msra.mxu0 %v344
    %394 = vmatpush.msra.mxu0 %v343
    %395 = vmatpush.msra.mxu0 %v342
    %396 = vmatmul.f32.gmra.mxu0 %v379
    %v397 = vpop.f32.mrf.mxu0
    %v398 = vadd.f32 0.0, %v397
    %399 = vdwg.mxu0
    %v401 = vrot.slane %v398, 6
    %v403 = vadd.f32 %v338, %v401
    %v404 = vtanh.pop %v403
    %v406 = vrot.slane %v404, 2
    %408 = vmatpush.msra.mxu0 %v357
    %409 = vmatpush.msra.mxu0 %v356
    %410 = vmatpush.msra.mxu0 %v355
    %411 = vmatpush.msra.mxu0 %v354
    %412 = vmatpush.msra.mxu0 %v353
    %413 = vmatpush.msra.mxu0 %v352
    %414 = vmatpush.msra.mxu0 %v351
    %415 = vmatpush.msra.mxu0 %v350
    %416 = vmatpush.msra.mxu0 %v349
    %417 = vmatpush.msra.mxu0 %v348
    %418 = vmatpush.msra.mxu0 %v347
    %419 = vmatpush.msra.mxu0 %v346
    %420 = vmatpush.msra.mxu0 %v345
    %421 = vmatpush.msra.mxu0 %v344
    %422 = vmatpush.msra.mxu0 %v343
    %423 = vmatpush.msra.mxu0 %v342
    %424 = vmatmul.f32.gmra.mxu0 %v406
    %v425 = vpop.f32.mrf.mxu0
    %v426 = vadd.f32 0.0, %v425
    %427 = vdwg.mxu0
    %v429 = vrot.slane %v426, 4
    %v431 = vadd.f32 %v338, %v429
    %v432 = vtanh.pop %v431
    %v434 = vrot.slane %v432, 4
    %436 = vmatpush.msra.mxu0 %v357
    %437 = vmatpush.msra.mxu0 %v356
    %438 = vmatpush.msra.mxu0 %v355
    %439 = vmatpush.msra.mxu0 %v354
    %440 = vmatpush.msra.mxu0 %v353
    %441 = vmatpush.msra.mxu0 %v352
    %442 = vmatpush.msra.mxu0 %v351
    %443 = vmatpush.msra.mxu0 %v350
    %444 = vmatpush.msra.mxu0 %v349
    %445 = vmatpush.msra.mxu0 %v348
    %446 = vmatpush.msra.mxu0 %v347
    %447 = vmatpush.msra.mxu0 %v346
    %448 = vmatpush.msra.mxu0 %v345
    %449 = vmatpush.msra.mxu0 %v344
    %450 = vmatpush.msra.mxu0 %v343
    %451 = vmatpush.msra.mxu0 %v342
    %452 = vmatmul.f32.gmra.mxu0 %v434
    %v453 = vpop.f32.mrf.mxu0
    %v454 = vadd.f32 0.0, %v453
    %455 = vdwg.mxu0
    %v457 = vrot.slane %v454, 2
    %v459 = vadd.f32 %v338, %v457
    %v460 = vtanh.pop %v459
    %v462 = vrot.slane %v460, 6
    %464 = vmatpush.msra.mxu0 %v357
    %465 = vmatpush.msra.mxu0 %v356
    %466 = vmatpush.msra.mxu0 %v355
    %467 = vmatpush.msra.mxu0 %v354
    %468 = vmatpush.msra.mxu0 %v353
    %469 = vmatpush.msra.mxu0 %v352
    %470 = vmatpush.msra.mxu0 %v351
    %471 = vmatpush.msra.mxu0 %v350
    %472 = vmatpush.msra.mxu0 %v349
    %473 = vmatpush.msra.mxu0 %v348
    %474 = vmatpush.msra.mxu0 %v347
    %475 = vmatpush.msra.mxu0 %v346
    %476 = vmatpush.msra.mxu0 %v345
    %477 = vmatpush.msra.mxu0 %v344
    %478 = vmatpush.msra.mxu0 %v343
    %479 = vmatpush.msra.mxu0 %v342
    %480 = vmatmul.f32.gmra.mxu0 %v462
    %v481 = vpop.f32.mrf.mxu0
    %v482 = vadd.f32 0.0, %v481
    %483 = vdwg.mxu0
    %v484 = vadd.f32 %v340, %v482
    %v485 = vtanh.pop %v484
    %486 = vmatpush.msra.mxu0 %v357
    %487 = vmatpush.msra.mxu0 %v356
    %488 = vmatpush.msra.mxu0 %v355
    %489 = vmatpush.msra.mxu0 %v354
    %490 = vmatpush.msra.mxu0 %v353
    %491 = vmatpush.msra.mxu0 %v352
    %492 = vmatpush.msra.mxu0 %v351
    %493 = vmatpush.msra.mxu0 %v350
    %494 = vmatpush.msra.mxu0 %v349
    %495 = vmatpush.msra.mxu0 %v348
    %496 = vmatpush.msra.mxu0 %v347
    %497 = vmatpush.msra.mxu0 %v346
    %498 = vmatpush.msra.mxu0 %v345
    %499 = vmatpush.msra.mxu0 %v344
    %500 = vmatpush.msra.mxu0 %v343
    %501 = vmatpush.msra.mxu0 %v342
    %502 = vmatmul.f32.gmra.mxu0 %v485
    %v503 = vpop.f32.mrf.mxu0
    %v504 = vadd.f32 0.0, %v503
    %505 = vdwg.mxu0
    %v507 = vrot.slane %v504, 6
    %v509 = vadd.f32 %v340, %v507
    %v510 = vtanh.pop %v509
    %v512 = vrot.slane %v510, 2
    %514 = vmatpush.msra.mxu0 %v357
    %515 = vmatpush.msra.mxu0 %v356
    %516 = vmatpush.msra.mxu0 %v355
    %517 = vmatpush.msra.mxu0 %v354
    %518 = vmatpush.msra.mxu0 %v353
    %519 = vmatpush.msra.mxu0 %v352
    %520 = vmatpush.msra.mxu0 %v351
    %521 = vmatpush.msra.mxu0 %v350
    %522 = vmatpush.msra.mxu0 %v349
    %523 = vmatpush.msra.mxu0 %v348
    %524 = vmatpush.msra.mxu0 %v347
    %525 = vmatpush.msra.mxu0 %v346
    %526 = vmatpush.msra.mxu0 %v345
    %527 = vmatpush.msra.mxu0 %v344
    %528 = vmatpush.msra.mxu0 %v343
    %529 = vmatpush.msra.mxu0 %v342
    %530 = vmatmul.f32.gmra.mxu0 %v512
    %v531 = vpop.f32.mrf.mxu0
    %v532 = vadd.f32 0.0, %v531
    %533 = vdwg.mxu0
    %v535 = vrot.slane %v532, 4
    %v537 = vadd.f32 %v340, %v535
    %v538 = vtanh.pop %v537
    %v540 = vrot.slane %v538, 4
    %542 = vmatpush.msra.mxu0 %v357
    %543 = vmatpush.msra.mxu0 %v356
    %544 = vmatpush.msra.mxu0 %v355
    %545 = vmatpush.msra.mxu0 %v354
    %546 = vmatpush.msra.mxu0 %v353
    %547 = vmatpush.msra.mxu0 %v352
    %548 = vmatpush.msra.mxu0 %v351
    %549 = vmatpush.msra.mxu0 %v350
    %550 = vmatpush.msra.mxu0 %v349
    %551 = vmatpush.msra.mxu0 %v348
    %552 = vmatpush.msra.mxu0 %v347
    %553 = vmatpush.msra.mxu0 %v346
    %554 = vmatpush.msra.mxu0 %v345
    %555 = vmatpush.msra.mxu0 %v344
    %556 = vmatpush.msra.mxu0 %v343
    %557 = vmatpush.msra.mxu0 %v342
    %558 = vmatmul.f32.gmra.mxu0 %v540
    %v559 = vpop.f32.mrf.mxu0
    %v560 = vadd.f32 0.0, %v559
    %561 = vdwg.mxu0
    %v563 = vrot.slane %v560, 2
    %v565 = vadd.f32 %v340, %v563
    %v566 = vtanh.pop %v565
    %vm567 = vcmask 1041408
    %v568 = vsel %vm567, %v379, %v404
    %vm569 = vcmask 1043456
    %v570 = vsel %vm569, %v568, %v432
    %vm571 = vcmask 1045504
    %v572 = vsel %vm571, %v570, %v460
    %v573 = vsel %vm567, %v485, %v510
    %v574 = vsel %vm569, %v573, %v538
    %v575 = vsel %vm571, %v574, %v566
    %v576 = vld [vmem:[#allocation13] sm:$0xff]
    %v577 = vld [vmem:[#allocation13 + $0x8] sm:$0xff]
    %v578 = vld [vmem:[#allocation13 + $0x10] sm:$0xff]
    %v579 = vld [vmem:[#allocation13 + $0x18] sm:$0xff]
    %v580 = vld [vmem:[#allocation13 + $0x20] sm:$0xff]
    %v581 = vld [vmem:[#allocation13 + $0x28] sm:$0xff]
    %v582 = vld [vmem:[#allocation13 + $0x30] sm:$0xff]
    %v583 = vld [vmem:[#allocation13 + $0x38] sm:$0xff]
    %v584 = vld [vmem:[#allocation13 + $0x40] sm:$0xff]
    %v585 = vld [vmem:[#allocation13 + $0x48] sm:$0xff]
    %v586 = vld [vmem:[#allocation13 + $0x50] sm:$0xff]
    %v587 = vld [vmem:[#allocation13 + $0x58] sm:$0xff]
    %v588 = vld [vmem:[#allocation13 + $0x60] sm:$0xff]
    %v589 = vld [vmem:[#allocation13 + $0x68] sm:$0xff]
    %v590 = vld [vmem:[#allocation13 + $0x70] sm:$0xff]
    %v591 = vld [vmem:[#allocation13 + $0x78] sm:$0xff]
    %v592 = vpack.c.bf16 %v566, %v566
    %v593 = vld [vmem:[%s8] sm:$0x3]
    %v595 = vperm.slane %v593, 0
    %v596 = vperm.slane %v593, 1
    %v600 = vrot.slane %v592, 3
    %v618 = vunpack.c.l.b16 %v576
    %v619 = vunpack.c.h.b16 %v576
    %v620 = vunpack.c.l.b16 %v577
    %v621 = vunpack.c.h.b16 %v577
    %v622 = vunpack.c.l.b16 %v578
    %v623 = vunpack.c.h.b16 %v578
    %v624 = vunpack.c.l.b16 %v579
    %v625 = vunpack.c.h.b16 %v579
    %v626 = vunpack.c.l.b16 %v580
    %v627 = vunpack.c.h.b16 %v580
    %v628 = vunpack.c.l.b16 %v581
    %v629 = vunpack.c.h.b16 %v581
    %v630 = vunpack.c.l.b16 %v582
    %v631 = vunpack.c.h.b16 %v582
    %v632 = vunpack.c.l.b16 %v583
    %v633 = vunpack.c.h.b16 %v583
    %v634 = vunpack.c.l.b16 %v584
    %v635 = vunpack.c.h.b16 %v584
    %v636 = vunpack.c.l.b16 %v585
    %v637 = vunpack.c.h.b16 %v585
    %v638 = vunpack.c.l.b16 %v586
    %v639 = vunpack.c.h.b16 %v586
    %v640 = vunpack.c.l.b16 %v587
    %v641 = vunpack.c.h.b16 %v587
    %v642 = vunpack.c.l.b16 %v588
    %v643 = vunpack.c.h.b16 %v588
    %v644 = vunpack.c.l.b16 %v589
    %v645 = vunpack.c.h.b16 %v589
    %v646 = vunpack.c.l.b16 %v590
    %v647 = vunpack.c.h.b16 %v590
    %v648 = vunpack.c.l.b16 %v591
    %v649 = vunpack.c.h.b16 %v591
    %v650 = vpack.c.b16 %v620, %v618
    %v651 = vpack.c.b16 %v621, %v619
    %v652 = vpack.c.b16 %v624, %v622
    %v653 = vpack.c.b16 %v625, %v623
    %v654 = vpack.c.b16 %v628, %v626
    %v655 = vpack.c.b16 %v629, %v627
    %v656 = vpack.c.b16 %v632, %v630
    %v657 = vpack.c.b16 %v633, %v631
    %v658 = vpack.c.b16 %v636, %v634
    %v659 = vpack.c.b16 %v637, %v635
    %v660 = vpack.c.b16 %v640, %v638
    %v661 = vpack.c.b16 %v641, %v639
    %v662 = vpack.c.b16 %v644, %v642
    %v663 = vpack.c.b16 %v645, %v643
    %v664 = vpack.c.b16 %v648, %v646
    %v665 = vpack.c.b16 %v649, %v647
    %682 = vmatpush.bf16.msra.mxu0 %v664
    %683 = vmatpush.bf16.msra.mxu0 %v662
    %684 = vmatpush.bf16.msra.mxu0 %v660
    %685 = vmatpush.bf16.msra.mxu0 %v658
    %686 = vmatpush.bf16.msra.mxu0 %v656
    %687 = vmatpush.bf16.msra.mxu0 %v654
    %688 = vmatpush.bf16.msra.mxu0 %v652
    %689 = vmatpush.bf16.msra.mxu0 %v650
    %690 = vmatmul.bf16.gmra.mxu0 %v600
    %v691 = vpop.f32.mrf.mxu0
    %v692 = vadd.f32 %v595, %v691
    %v693 = vpop.f32.mrf.mxu0
    %694 = vdwg.mxu0
    %695 = vmatpush.bf16.msra.mxu0 %v665
    %696 = vmatpush.bf16.msra.mxu0 %v663
    %697 = vmatpush.bf16.msra.mxu0 %v661
    %698 = vmatpush.bf16.msra.mxu0 %v659
    %699 = vmatpush.bf16.msra.mxu0 %v657
    %700 = vmatpush.bf16.msra.mxu0 %v655
    %701 = vmatpush.bf16.msra.mxu0 %v653
    %702 = vmatpush.bf16.msra.mxu0 %v651
    %703 = vmatmul.bf16.gmra.mxu0 %v600
    %v704 = vpop.f32.mrf.mxu0
    %v705 = vadd.f32 %v596, %v704
    %v706 = vpop.f32.mrf.mxu0
    %707 = vdwg.mxu0
    %v708 = vmul.f32 %v705, 0.5
    %v709 = vmul.f32 %v708, 1.442695
    %v710 = vpow.pop %v709
    %v711 = vld [vmem:[#allocation7] sm:$0x3]
    %v712 = vmul.f32 %v710, %v711
    %v713 = vadd.f32 %v692, %v712
    %v714 = vld [vmem:[#allocation14] sm:$0xf]
    %v715 = vld [vmem:[#allocation14 + $0x4] sm:$0xf]
    %v716 = vld [vmem:[#allocation14 + $0x8] sm:$0xf]
    %v717 = vld [vmem:[#allocation14 + $0xc] sm:$0xf]
    %v718 = vld [vmem:[#allocation14 + $0x10] sm:$0xf]
    %v719 = vld [vmem:[#allocation14 + $0x14] sm:$0xf]
    %v720 = vld [vmem:[#allocation14 + $0x18] sm:$0xf]
    %v721 = vld [vmem:[#allocation14 + $0x1c] sm:$0xf]
    %v722 = vld [vmem:[#allocation14 + $0x20] sm:$0xf]
    %v723 = vld [vmem:[#allocation14 + $0x24] sm:$0xf]
    %v724 = vld [vmem:[#allocation14 + $0x28] sm:$0xf]
    %v725 = vld [vmem:[#allocation14 + $0x2c] sm:$0xf]
    %v726 = vld [vmem:[#allocation14 + $0x30] sm:$0xf]
    %v727 = vld [vmem:[#allocation14 + $0x34] sm:$0xf]
    %v728 = vld [vmem:[#allocation14 + $0x38] sm:$0xf]
    %v729 = vld [vmem:[#allocation14 + $0x3c] sm:$0xf]
    %v730 = vpack.c.bf16 %v713, %v713
    %v747 = vunpack.c.l.b16 %v714
    %v748 = vunpack.c.l.b16 %v715
    %v749 = vunpack.c.l.b16 %v716
    %v750 = vunpack.c.l.b16 %v717
    %v751 = vunpack.c.l.b16 %v718
    %v752 = vunpack.c.l.b16 %v719
    %v753 = vunpack.c.l.b16 %v720
    %v754 = vunpack.c.l.b16 %v721
    %v755 = vunpack.c.l.b16 %v722
    %v756 = vunpack.c.l.b16 %v723
    %v757 = vunpack.c.l.b16 %v724
    %v758 = vunpack.c.l.b16 %v725
    %v759 = vunpack.c.l.b16 %v726
    %v760 = vunpack.c.l.b16 %v727
    %v761 = vunpack.c.l.b16 %v728
    %v762 = vunpack.c.l.b16 %v729
    %v763 = vpack.c.b16 %v748, %v747
    %v764 = vpack.c.b16 %v750, %v749
    %v765 = vpack.c.b16 %v752, %v751
    %v766 = vpack.c.b16 %v754, %v753
    %v767 = vpack.c.b16 %v756, %v755
    %v768 = vpack.c.b16 %v758, %v757
    %v769 = vpack.c.b16 %v760, %v759
    %v770 = vpack.c.b16 %v762, %v761
    %779 = vmatpush.bf16.msra.mxu0 %v770
    %780 = vmatpush.bf16.msra.mxu0 %v769
    %781 = vmatpush.bf16.msra.mxu0 %v768
    %782 = vmatpush.bf16.msra.mxu0 %v767
    %783 = vmatpush.bf16.msra.mxu0 %v766
    %784 = vmatpush.bf16.msra.mxu0 %v765
    %785 = vmatpush.bf16.msra.mxu0 %v764
    %786 = vmatpush.bf16.msra.mxu0 %v763
    %787 = vmatmul.bf16.gmra.mxu0 %v730
    %v788 = vpop.f32.mrf.mxu0
    %v789 = vadd.f32 0.0, %v788
    %v790 = vpop.f32.mrf.mxu0
    %791 = vdwg.mxu0
    %v793 = vrot.slane %v789, 2
    %v795 = vadd.f32 %v566, %v793
    %v796 = vld [vmem:[%s10] sm:$0x1]
    %v798 = vperm.slane %v796, 0
    %v800 = vadd.f32 %v795, %v798
    %v801 = vtanh.pop %v800
    %802 = vst [vmem:[#allocation26] sm:$0x3] %v692
    %803 = vst [vmem:[#allocation28] sm:$0x3] %v705
    %804 = vst [vmem:[#allocation29] sm:$0x3] %v713
    %v805 = vld [vmem:[#allocation5] sm:$0xf]
    %v806 = vld [vmem:[#allocation5 + $0x4] sm:$0xf]
    %v807 = vld [vmem:[#allocation16] sm:$0xf]
    %v808 = vld [vmem:[#allocation16 + $0x4] sm:$0xf]
    %v809 = vld [vmem:[#allocation16 + $0x8] sm:$0xf]
    %v810 = vld [vmem:[#allocation16 + $0xc] sm:$0xf]
    %v811 = vld [vmem:[#allocation16 + $0x10] sm:$0xf]
    %v812 = vld [vmem:[#allocation16 + $0x14] sm:$0xf]
    %v813 = vld [vmem:[#allocation16 + $0x18] sm:$0xf]
    %v814 = vld [vmem:[#allocation16 + $0x1c] sm:$0xf]
    %v815 = vld [vmem:[#allocation16 + $0x20] sm:$0xf]
    %v816 = vld [vmem:[#allocation16 + $0x24] sm:$0xf]
    %v817 = vld [vmem:[#allocation16 + $0x28] sm:$0xf]
    %v818 = vld [vmem:[#allocation16 + $0x2c] sm:$0xf]
    %v819 = vld [vmem:[#allocation16 + $0x30] sm:$0xf]
    %v820 = vld [vmem:[#allocation16 + $0x34] sm:$0xf]
    %v821 = vld [vmem:[#allocation16 + $0x38] sm:$0xf]
    %v822 = vld [vmem:[#allocation16 + $0x3c] sm:$0xf]
    %v823 = vld [vmem:[%s13] sm:$0x1]
    %v825 = vperm.slane %v823, 0
    %v829 = vunpack.c.l.b16 %v805
    %v830 = vunpack.c.l.b16 %v806
    %v831 = vpack.c.b16 %v830, %v829
    %v849 = vunpack.c.l.b16 %v807
    %v850 = vunpack.c.l.b16 %v808
    %v851 = vunpack.c.l.b16 %v809
    %v852 = vunpack.c.l.b16 %v810
    %v853 = vunpack.c.l.b16 %v811
    %v854 = vunpack.c.l.b16 %v812
    %v855 = vunpack.c.l.b16 %v813
    %v856 = vunpack.c.l.b16 %v814
    %v857 = vunpack.c.l.b16 %v815
    %v858 = vunpack.c.l.b16 %v816
    %v859 = vunpack.c.l.b16 %v817
    %v860 = vunpack.c.l.b16 %v818
    %v861 = vunpack.c.l.b16 %v819
    %v862 = vunpack.c.l.b16 %v820
    %v863 = vunpack.c.l.b16 %v821
    %v864 = vunpack.c.l.b16 %v822
    %v865 = vpack.c.b16 %v850, %v849
    %v866 = vpack.c.b16 %v852, %v851
    %v867 = vpack.c.b16 %v854, %v853
    %v868 = vpack.c.b16 %v856, %v855
    %v869 = vpack.c.b16 %v858, %v857
    %v870 = vpack.c.b16 %v860, %v859
    %v871 = vpack.c.b16 %v862, %v861
    %v872 = vpack.c.b16 %v864, %v863
    %881 = vmatpush.bf16.msra.mxu0 %v872
    %882 = vmatpush.bf16.msra.mxu0 %v871
    %883 = vmatpush.bf16.msra.mxu0 %v870
    %884 = vmatpush.bf16.msra.mxu0 %v869
    %885 = vmatpush.bf16.msra.mxu0 %v868
    %886 = vmatpush.bf16.msra.mxu0 %v867
    %887 = vmatpush.bf16.msra.mxu0 %v866
    %888 = vmatpush.bf16.msra.mxu0 %v865
    %889 = vmatmul.bf16.gmra.mxu0 %v831
    %v890 = vpop.f32.mrf.mxu0
    %v891 = vadd.f32 %v825, %v890
    %v892 = vpop.f32.mrf.mxu0
    %v893 = vadd.f32 %v825, %v892
    %894 = vdwg.mxu0
    %v895 = vld [vmem:[#allocation17] sm:$0xff]
    %v896 = vld [vmem:[#allocation17 + $0x8] sm:$0xff]
    %v897 = vld [vmem:[#allocation17 + $0x10] sm:$0xff]
    %v898 = vld [vmem:[#allocation17 + $0x18] sm:$0xff]
    %v899 = vld [vmem:[#allocation17 + $0x20] sm:$0xff]
    %v900 = vld [vmem:[#allocation17 + $0x28] sm:$0xff]
    %v901 = vld [vmem:[#allocation17 + $0x30] sm:$0xff]
    %v902 = vld [vmem:[#allocation17 + $0x38] sm:$0xff]
    %v903 = vld [vmem:[#allocation17 + $0x40] sm:$0xff]
    %v904 = vld [vmem:[#allocation17 + $0x48] sm:$0xff]
    %v905 = vld [vmem:[#allocation17 + $0x50] sm:$0xff]
    %v906 = vld [vmem:[#allocation17 + $0x58] sm:$0xff]
    %v907 = vld [vmem:[#allocation17 + $0x60] sm:$0xff]
    %v908 = vld [vmem:[#allocation17 + $0x68] sm:$0xff]
    %v909 = vld [vmem:[#allocation17 + $0x70] sm:$0xff]
    %v910 = vld [vmem:[#allocation17 + $0x78] sm:$0xff]
    %v912 = vrot.slane %v801, 6
    %914 = vmatpush.msra.mxu0 %v910
    %915 = vmatpush.msra.mxu0 %v909
    %916 = vmatpush.msra.mxu0 %v908
    %917 = vmatpush.msra.mxu0 %v907
    %918 = vmatpush.msra.mxu0 %v906
    %919 = vmatpush.msra.mxu0 %v905
    %920 = vmatpush.msra.mxu0 %v904
    %921 = vmatpush.msra.mxu0 %v903
    %922 = vmatpush.msra.mxu0 %v902
    %923 = vmatpush.msra.mxu0 %v901
    %924 = vmatpush.msra.mxu0 %v900
    %925 = vmatpush.msra.mxu0 %v899
    %926 = vmatpush.msra.mxu0 %v898
    %927 = vmatpush.msra.mxu0 %v897
    %928 = vmatpush.msra.mxu0 %v896
    %929 = vmatpush.msra.mxu0 %v895
    %930 = vmatmul.f32.gmra.mxu0 %v912
    %v931 = vpop.f32.mrf.mxu0
    %v932 = vadd.f32 0.0, %v931
    %933 = vdwg.mxu0
    %v934 = vadd.f32 %v891, %v932
    %v935 = vtanh.pop %v934
    %936 = vmatpush.msra.mxu0 %v910
    %937 = vmatpush.msra.mxu0 %v909
    %938 = vmatpush.msra.mxu0 %v908
    %939 = vmatpush.msra.mxu0 %v907
    %940 = vmatpush.msra.mxu0 %v906
    %941 = vmatpush.msra.mxu0 %v905
    %942 = vmatpush.msra.mxu0 %v904
    %943 = vmatpush.msra.mxu0 %v903
    %944 = vmatpush.msra.mxu0 %v902
    %945 = vmatpush.msra.mxu0 %v901
    %946 = vmatpush.msra.mxu0 %v900
    %947 = vmatpush.msra.mxu0 %v899
    %948 = vmatpush.msra.mxu0 %v898
    %949 = vmatpush.msra.mxu0 %v897
    %950 = vmatpush.msra.mxu0 %v896
    %951 = vmatpush.msra.mxu0 %v895
    %952 = vmatmul.f32.gmra.mxu0 %v935
    %v953 = vpop.f32.mrf.mxu0
    %v954 = vadd.f32 0.0, %v953
    %955 = vdwg.mxu0
    %v957 = vrot.slane %v954, 6
    %v959 = vadd.f32 %v891, %v957
    %v960 = vtanh.pop %v959
    %v962 = vrot.slane %v960, 2
    %964 = vmatpush.msra.mxu0 %v910
    %965 = vmatpush.msra.mxu0 %v909
    %966 = vmatpush.msra.mxu0 %v908
    %967 = vmatpush.msra.mxu0 %v907
    %968 = vmatpush.msra.mxu0 %v906
    %969 = vmatpush.msra.mxu0 %v905
    %970 = vmatpush.msra.mxu0 %v904
    %971 = vmatpush.msra.mxu0 %v903
    %972 = vmatpush.msra.mxu0 %v902
    %973 = vmatpush.msra.mxu0 %v901
    %974 = vmatpush.msra.mxu0 %v900
    %975 = vmatpush.msra.mxu0 %v899
    %976 = vmatpush.msra.mxu0 %v898
    %977 = vmatpush.msra.mxu0 %v897
    %978 = vmatpush.msra.mxu0 %v896
    %979 = vmatpush.msra.mxu0 %v895
    %980 = vmatmul.f32.gmra.mxu0 %v962
    %v981 = vpop.f32.mrf.mxu0
    %v982 = vadd.f32 0.0, %v981
    %983 = vdwg.mxu0
    %v985 = vrot.slane %v982, 4
    %v987 = vadd.f32 %v891, %v985
    %v988 = vtanh.pop %v987
    %v990 = vrot.slane %v988, 4
    %992 = vmatpush.msra.mxu0 %v910
    %993 = vmatpush.msra.mxu0 %v909
    %994 = vmatpush.msra.mxu0 %v908
    %995 = vmatpush.msra.mxu0 %v907
    %996 = vmatpush.msra.mxu0 %v906
    %997 = vmatpush.msra.mxu0 %v905
    %998 = vmatpush.msra.mxu0 %v904
    %999 = vmatpush.msra.mxu0 %v903
    %1000 = vmatpush.msra.mxu0 %v902
    %1001 = vmatpush.msra.mxu0 %v901
    %1002 = vmatpush.msra.mxu0 %v900
    %1003 = vmatpush.msra.mxu0 %v899
    %1004 = vmatpush.msra.mxu0 %v898
    %1005 = vmatpush.msra.mxu0 %v897
    %1006 = vmatpush.msra.mxu0 %v896
    %1007 = vmatpush.msra.mxu0 %v895
    %1008 = vmatmul.f32.gmra.mxu0 %v990
    %v1009 = vpop.f32.mrf.mxu0
    %v1010 = vadd.f32 0.0, %v1009
    %1011 = vdwg.mxu0
    %v1013 = vrot.slane %v1010, 2
    %v1015 = vadd.f32 %v891, %v1013
    %v1016 = vtanh.pop %v1015
    %v1018 = vrot.slane %v1016, 6
    %1020 = vmatpush.msra.mxu0 %v910
    %1021 = vmatpush.msra.mxu0 %v909
    %1022 = vmatpush.msra.mxu0 %v908
    %1023 = vmatpush.msra.mxu0 %v907
    %1024 = vmatpush.msra.mxu0 %v906
    %1025 = vmatpush.msra.mxu0 %v905
    %1026 = vmatpush.msra.mxu0 %v904
    %1027 = vmatpush.msra.mxu0 %v903
    %1028 = vmatpush.msra.mxu0 %v902
    %1029 = vmatpush.msra.mxu0 %v901
    %1030 = vmatpush.msra.mxu0 %v900
    %1031 = vmatpush.msra.mxu0 %v899
    %1032 = vmatpush.msra.mxu0 %v898
    %1033 = vmatpush.msra.mxu0 %v897
    %1034 = vmatpush.msra.mxu0 %v896
    %1035 = vmatpush.msra.mxu0 %v895
    %1036 = vmatmul.f32.gmra.mxu0 %v1018
    %v1037 = vpop.f32.mrf.mxu0
    %v1038 = vadd.f32 0.0, %v1037
    %1039 = vdwg.mxu0
    %v1040 = vadd.f32 %v893, %v1038
    %v1041 = vtanh.pop %v1040
    %1042 = vmatpush.msra.mxu0 %v910
    %1043 = vmatpush.msra.mxu0 %v909
    %1044 = vmatpush.msra.mxu0 %v908
    %1045 = vmatpush.msra.mxu0 %v907
    %1046 = vmatpush.msra.mxu0 %v906
    %1047 = vmatpush.msra.mxu0 %v905
    %1048 = vmatpush.msra.mxu0 %v904
    %1049 = vmatpush.msra.mxu0 %v903
    %1050 = vmatpush.msra.mxu0 %v902
    %1051 = vmatpush.msra.mxu0 %v901
    %1052 = vmatpush.msra.mxu0 %v900
    %1053 = vmatpush.msra.mxu0 %v899
    %1054 = vmatpush.msra.mxu0 %v898
    %1055 = vmatpush.msra.mxu0 %v897
    %1056 = vmatpush.msra.mxu0 %v896
    %1057 = vmatpush.msra.mxu0 %v895
    %1058 = vmatmul.f32.gmra.mxu0 %v1041
    %v1059 = vpop.f32.mrf.mxu0
    %v1060 = vadd.f32 0.0, %v1059
    %1061 = vdwg.mxu0
    %v1063 = vrot.slane %v1060, 6
    %v1065 = vadd.f32 %v893, %v1063
    %v1066 = vtanh.pop %v1065
    %v1068 = vrot.slane %v1066, 2
    %1070 = vmatpush.msra.mxu0 %v910
    %1071 = vmatpush.msra.mxu0 %v909
    %1072 = vmatpush.msra.mxu0 %v908
    %1073 = vmatpush.msra.mxu0 %v907
    %1074 = vmatpush.msra.mxu0 %v906
    %1075 = vmatpush.msra.mxu0 %v905
    %1076 = vmatpush.msra.mxu0 %v904
    %1077 = vmatpush.msra.mxu0 %v903
    %1078 = vmatpush.msra.mxu0 %v902
    %1079 = vmatpush.msra.mxu0 %v901
    %1080 = vmatpush.msra.mxu0 %v900
    %1081 = vmatpush.msra.mxu0 %v899
    %1082 = vmatpush.msra.mxu0 %v898
    %1083 = vmatpush.msra.mxu0 %v897
    %1084 = vmatpush.msra.mxu0 %v896
    %1085 = vmatpush.msra.mxu0 %v895
    %1086 = vmatmul.f32.gmra.mxu0 %v1068
    %v1087 = vpop.f32.mrf.mxu0
    %v1088 = vadd.f32 0.0, %v1087
    %1089 = vdwg.mxu0
    %v1091 = vrot.slane %v1088, 4
    %v1093 = vadd.f32 %v893, %v1091
    %v1094 = vtanh.pop %v1093
    %v1096 = vrot.slane %v1094, 4
    %1098 = vmatpush.msra.mxu0 %v910
    %1099 = vmatpush.msra.mxu0 %v909
    %1100 = vmatpush.msra.mxu0 %v908
    %1101 = vmatpush.msra.mxu0 %v907
    %1102 = vmatpush.msra.mxu0 %v906
    %1103 = vmatpush.msra.mxu0 %v905
    %1104 = vmatpush.msra.mxu0 %v904
    %1105 = vmatpush.msra.mxu0 %v903
    %1106 = vmatpush.msra.mxu0 %v902
    %1107 = vmatpush.msra.mxu0 %v901
    %1108 = vmatpush.msra.mxu0 %v900
    %1109 = vmatpush.msra.mxu0 %v899
    %1110 = vmatpush.msra.mxu0 %v898
    %1111 = vmatpush.msra.mxu0 %v897
    %1112 = vmatpush.msra.mxu0 %v896
    %1113 = vmatpush.msra.mxu0 %v895
    %1114 = vmatmul.f32.gmra.mxu0 %v1096
    %v1115 = vpop.f32.mrf.mxu0
    %v1116 = vadd.f32 0.0, %v1115
    %1117 = vdwg.mxu0
    %v1119 = vrot.slane %v1116, 2
    %v1121 = vadd.f32 %v893, %v1119
    %v1122 = vtanh.pop %v1121
    %v1123 = vsel %vm567, %v935, %v960
    %v1124 = vsel %vm569, %v1123, %v988
    %v1125 = vsel %vm571, %v1124, %v1016
    %v1126 = vsel %vm567, %v1041, %v1066
    %v1127 = vsel %vm569, %v1126, %v1094
    %v1128 = vsel %vm571, %v1127, %v1122
    %1129 = vst [vmem:[#allocation25 - $0x6] sm:$0xc0] %v1122
    %v1130 = vpack.c.bf16 %v1128, %v1125
    %v1131 = vpack.c.bf16 %v575, %v572
    %v1132 = vld [vmem:[#allocation8] sm:$0xff]
    %v1133 = vld [vmem:[#allocation8 + $0x8] sm:$0xff]
    %1134 = vmatpush.bf16.xpose.msra.mxu0 0
    %1135 = vmatpush.bf16.xpose.msra.mxu0 0
    %1136 = vmatpush.bf16.xpose.msra.mxu0 0
    %1137 = vmatpush.bf16.xpose.msra.mxu0 0
    %1138 = vmatpush.bf16.xpose.msra.mxu0 0
    %1139 = vmatpush.bf16.xpose.msra.mxu0 0
    %1140 = vmatpush.bf16.xpose.msra.mxu0 0
    %1141 = vmatpush.bf16.xpose.msra.mxu0 %v1131
    %1142 = vmatmul.bf16.gmra.mxu0 %v1130
    %v1143 = vpop.f32.mrf.mxu0
    %v1144 = vadd.f32 %v1132, %v1143
    %v1145 = vpop.f32.mrf.mxu0
    %v1146 = vadd.f32 %v1133, %v1145
    %1147 = vdwg.mxu0
    %vm1148 = vcmask 130048
    %v1149 = vsel %vm1148, %v1144, -inf
    %1150 = vmax.xlane.f32.xlu0 %v1149
    %v1151 = vpop.xlane.xlu0 %1150
    %v1152 = vsel %vm1148, %v1146, -inf
    %1153 = vmax.xlane.f32.xlu0 %v1152
    %v1154 = vpop.xlane.xlu0 %1153
    %v1155 = vsub.f32 %v1144, %v1151
    %v1156 = vsub.f32 %v1146, %v1154
    %v1157 = vmul.f32 %v1155, 1.442695
    %v1158 = vpow.pop %v1157
    %v1159 = vmul.f32 %v1156, 1.442695
    %v1160 = vpow.pop %v1159
    %v1161 = vsel %vm1148, %v1158, 0.0
    %1162 = vadd.xlane.f32.xlu0 %v1161
    %v1163 = vpop.xlane.xlu0 %1162
    %v1164 = vsel %vm1148, %v1160, 0.0
    %1165 = vadd.xlane.f32.xlu0 %v1164
    %v1166 = vpop.xlane.xlu0 %1165
    %v1167 = vrcp.pop %v1163
    %v1168 = vrcp.pop %v1166
    %v1169 = vmul.f32 %v1158, %v1167
    %v1170 = vmul.f32 %v1160, %v1168
    %1171 = vst.msk [vmem:[#allocation23] sm:$0xff] %vm1148, %v1169
    %1172 = vst.msk [vmem:[#allocation23 + $0x8] sm:$0xff] %vm1148, %v1170
    %v1173 = vpack.c.bf16 %v1170, %v1169
    %v1175 = vsel %vm1148, %v1173, 0
    %1177 = vmatpush.bf16.msra.mxu0 0
    %1178 = vmatpush.bf16.msra.mxu0 0
    %1179 = vmatpush.bf16.msra.mxu0 0
    %1180 = vmatpush.bf16.msra.mxu0 0
    %1181 = vmatpush.bf16.msra.mxu0 0
    %1182 = vmatpush.bf16.msra.mxu0 0
    %1183 = vmatpush.bf16.msra.mxu0 0
    %1184 = vmatpush.bf16.msra.mxu0 %v1131
    %1185 = vmatmul.bf16.gmra.mxu0 %v1175
    %v1186 = vpop.f32.mrf.mxu0
    %v1187 = vadd.f32 0.0, %v1186
    %v1188 = vpop.f32.mrf.mxu0
    %v1189 = vadd.f32 0.0, %v1188
    %1190 = vdwg.mxu0
    %v1191 = vld [vmem:[#allocation19] sm:$0xf]
    %v1192 = vld [vmem:[#allocation19 + $0x4] sm:$0xf]
    %v1193 = vld [vmem:[#allocation19 + $0x8] sm:$0xf]
    %v1194 = vld [vmem:[#allocation19 + $0xc] sm:$0xf]
    %v1195 = vld [vmem:[#allocation19 + $0x10] sm:$0xf]
    %v1196 = vld [vmem:[#allocation19 + $0x14] sm:$0xf]
    %v1197 = vld [vmem:[#allocation19 + $0x18] sm:$0xf]
    %v1198 = vld [vmem:[#allocation19 + $0x1c] sm:$0xf]
    %v1199 = vld [vmem:[#allocation19 + $0x20] sm:$0xf]
    %v1200 = vld [vmem:[#allocation19 + $0x24] sm:$0xf]
    %v1201 = vld [vmem:[#allocation19 + $0x28] sm:$0xf]
    %v1202 = vld [vmem:[#allocation19 + $0x2c] sm:$0xf]
    %v1203 = vld [vmem:[#allocation19 + $0x30] sm:$0xf]
    %v1204 = vld [vmem:[#allocation19 + $0x34] sm:$0xf]
    %v1205 = vld [vmem:[#allocation19 + $0x38] sm:$0xf]
    %v1206 = vld [vmem:[#allocation19 + $0x3c] sm:$0xf]
    %v1207 = vld [vmem:[#allocation20] sm:$0xf]
    %v1208 = vld [vmem:[#allocation20 + $0x4] sm:$0xf]
    %v1209 = vld [vmem:[#allocation20 + $0x8] sm:$0xf]
    %v1210 = vld [vmem:[#allocation20 + $0xc] sm:$0xf]
    %v1211 = vld [vmem:[#allocation20 + $0x10] sm:$0xf]
    %v1212 = vld [vmem:[#allocation20 + $0x14] sm:$0xf]
    %v1213 = vld [vmem:[#allocation20 + $0x18] sm:$0xf]
    %v1214 = vld [vmem:[#allocation20 + $0x1c] sm:$0xf]
    %v1215 = vld [vmem:[#allocation20 + $0x20] sm:$0xf]
    %v1216 = vld [vmem:[#allocation20 + $0x24] sm:$0xf]
    %v1217 = vld [vmem:[#allocation20 + $0x28] sm:$0xf]
    %v1218 = vld [vmem:[#allocation20 + $0x2c] sm:$0xf]
    %v1219 = vld [vmem:[#allocation20 + $0x30] sm:$0xf]
    %v1220 = vld [vmem:[#allocation20 + $0x34] sm:$0xf]
    %v1221 = vld [vmem:[#allocation20 + $0x38] sm:$0xf]
    %v1222 = vld [vmem:[#allocation20 + $0x3c] sm:$0xf]
    %v1223 = vpack.c.bf16 %v1189, %v1187
    %v1240 = vunpack.c.l.b16 %v1207
    %v1241 = vunpack.c.l.b16 %v1208
    %v1242 = vunpack.c.l.b16 %v1209
    %v1243 = vunpack.c.l.b16 %v1210
    %v1244 = vunpack.c.l.b16 %v1211
    %v1245 = vunpack.c.l.b16 %v1212
    %v1246 = vunpack.c.l.b16 %v1213
    %v1247 = vunpack.c.l.b16 %v1214
    %v1248 = vunpack.c.l.b16 %v1215
    %v1249 = vunpack.c.l.b16 %v1216
    %v1250 = vunpack.c.l.b16 %v1217
    %v1251 = vunpack.c.l.b16 %v1218
    %v1252 = vunpack.c.l.b16 %v1219
    %v1253 = vunpack.c.l.b16 %v1220
    %v1254 = vunpack.c.l.b16 %v1221
    %v1255 = vunpack.c.l.b16 %v1222
    %v1256 = vpack.c.b16 %v1241, %v1240
    %v1257 = vpack.c.b16 %v1243, %v1242
    %v1258 = vpack.c.b16 %v1245, %v1244
    %v1259 = vpack.c.b16 %v1247, %v1246
    %v1260 = vpack.c.b16 %v1249, %v1248
    %v1261 = vpack.c.b16 %v1251, %v1250
    %v1262 = vpack.c.b16 %v1253, %v1252
    %v1263 = vpack.c.b16 %v1255, %v1254
    %1272 = vmatpush.bf16.msra.mxu0 %v1263
    %1273 = vmatpush.bf16.msra.mxu0 %v1262
    %1274 = vmatpush.bf16.msra.mxu0 %v1261
    %1275 = vmatpush.bf16.msra.mxu0 %v1260
    %1276 = vmatpush.bf16.msra.mxu0 %v1259
    %1277 = vmatpush.bf16.msra.mxu0 %v1258
    %1278 = vmatpush.bf16.msra.mxu0 %v1257
    %1279 = vmatpush.bf16.msra.mxu0 %v1256
    %1280 = vmatmul.bf16.gmra.mxu0 %v1223
    %v1281 = vpop.f32.mrf.mxu0
    %v1282 = vadd.f32 0.0, %v1281
    %v1283 = vpop.f32.mrf.mxu0
    %v1284 = vadd.f32 0.0, %v1283
    %1285 = vdwg.mxu0
    %v1302 = vunpack.c.l.b16 %v1191
    %v1303 = vunpack.c.l.b16 %v1192
    %v1304 = vunpack.c.l.b16 %v1193
    %v1305 = vunpack.c.l.b16 %v1194
    %v1306 = vunpack.c.l.b16 %v1195
    %v1307 = vunpack.c.l.b16 %v1196
    %v1308 = vunpack.c.l.b16 %v1197
    %v1309 = vunpack.c.l.b16 %v1198
    %v1310 = vunpack.c.l.b16 %v1199
    %v1311 = vunpack.c.l.b16 %v1200
    %v1312 = vunpack.c.l.b16 %v1201
    %v1313 = vunpack.c.l.b16 %v1202
    %v1314 = vunpack.c.l.b16 %v1203
    %v1315 = vunpack.c.l.b16 %v1204
    %v1316 = vunpack.c.l.b16 %v1205
    %v1317 = vunpack.c.l.b16 %v1206
    %v1318 = vpack.c.b16 %v1303, %v1302
    %v1319 = vpack.c.b16 %v1305, %v1304
    %v1320 = vpack.c.b16 %v1307, %v1306
    %v1321 = vpack.c.b16 %v1309, %v1308
    %v1322 = vpack.c.b16 %v1311, %v1310
    %v1323 = vpack.c.b16 %v1313, %v1312
    %v1324 = vpack.c.b16 %v1315, %v1314
    %v1325 = vpack.c.b16 %v1317, %v1316
    %1334 = vmatpush.bf16.msra.mxu0 %v1325
    %1335 = vmatpush.bf16.msra.mxu0 %v1324
    %1336 = vmatpush.bf16.msra.mxu0 %v1323
    %1337 = vmatpush.bf16.msra.mxu0 %v1322
    %1338 = vmatpush.bf16.msra.mxu0 %v1321
    %1339 = vmatpush.bf16.msra.mxu0 %v1320
    %1340 = vmatpush.bf16.msra.mxu0 %v1319
    %1341 = vmatpush.bf16.msra.mxu0 %v1318
    %1342 = vmatmul.bf16.gmra.mxu0 %v1130
    %v1343 = vpop.f32.mrf.mxu0
    %v1344 = vadd.f32 %v1282, %v1343
    %v1345 = vpop.f32.mrf.mxu0
    %v1346 = vadd.f32 %v1284, %v1345
    %1347 = vdwg.mxu0
    %v1348 = vld [vmem:[%s16] sm:$0x1]
    %v1350 = vperm.slane %v1348, 0
    %v1352 = vadd.f32 %v1344, %v1350
    %v1353 = vadd.f32 %v1346, %v1350
    %v1354 = vtanh.pop %v1352
    %v1355 = vtanh.pop %v1353
    %1356 = vst [vmem:[#allocation22] sm:$0xff] %v1354
    %1357 = vst [vmem:[#allocation22 + $0x8] sm:$0xff] %v1355
    // Predicated region
    $region118: #{tpu_custom_call.1} parent=1 // pred_check
      _
    $region119: #{tpu_custom_call.1} parent=1 // pred_check_branch
      %1359 = sbr.rel (0) target = $region121
    $region120: #{tpu_custom_call.1} parent=1 // pred_region
      %1361 = vsyncadd [#allocation4], 0
      %s1362 = sshll.u32 [#allocation22], 4
      %s1363 = int_to_ptr.vmem [resolvable:$true] %s1362
      %s1364 = sshll.u32 %s17, 4
      %s1365 = int_to_ptr.hbm [resolvable:$true] %s1364
      %1370 = dma.vmem_to_hbm [thread:$0]  %s1363, 256, %s1365, [#allocation4], 128, 128, 8
    $region121: #{tpu_custom_call.1} parent=1 // pred_fallthru
      _
    // Predicated region
    $region122: #{tpu_custom_call.1} parent=1 // pred_check
      _
    $region123: #{tpu_custom_call.1} parent=1 // pred_check_branch
      %1372 = sbr.rel (0) target = $region125
    $region124: #{tpu_custom_call.1} parent=1 // pred_region
      %1374 = vsyncadd [#allocation24], 0
      %s1375 = sshll.u32 [#allocation23], 4
      %s1376 = int_to_ptr.vmem [resolvable:$true] %s1375
      %s1377 = sshll.u32 %s18, 4
      %s1378 = int_to_ptr.hbm [resolvable:$true] %s1377
      %1383 = dma.vmem_to_hbm [thread:$0]  %s1376, 256, %s1378, [#allocation24], 128, 128, 8
    $region125: #{tpu_custom_call.1} parent=1 // pred_fallthru
      _
    // Predicated region
    $region126: #{tpu_custom_call.1} parent=1 // pred_check
      _
    $region127: #{tpu_custom_call.1} parent=1 // pred_check_branch
      %1385 = sbr.rel (0) target = $region129
    $region128: #{tpu_custom_call.1} parent=1 // pred_region
      %1387 = vsyncadd [#allocation24], 0
      %s1389 = sshll.u32 [#allocation25], 4
      %s1390 = int_to_ptr.vmem [resolvable:$true] %s1389
      %s1391 = sshll.u32 %s19, 4
      %s1392 = int_to_ptr.hbm [resolvable:$true] %s1391
      %1394 = dma.vmem_to_hbm [thread:$0]  %s1390, 32, %s1392, [#allocation24]
    $region129: #{tpu_custom_call.1} parent=1 // pred_fallthru
      _
    // Predicated region
    $region130: #{tpu_custom_call.1} parent=1 // pred_check
      _
    $region131: #{tpu_custom_call.1} parent=1 // pred_check_branch
      %1396 = sbr.rel (0) target = $region133
    $region132: #{tpu_custom_call.1} parent=1 // pred_region
      %1398 = vsyncadd [#allocation27], 0
      %s1400 = sshll.u32 [#allocation26], 4
      %s1401 = int_to_ptr.vmem [resolvable:$true] %s1400
      %s1402 = sshll.u32 %s20, 4
      %s1403 = int_to_ptr.hbm [resolvable:$true] %s1402
      %1405 = dma.vmem_to_hbm [thread:$0]  %s1401, 32, %s1403, [#allocation27]
    $region133: #{tpu_custom_call.1} parent=1 // pred_fallthru
      _
    // Predicated region
    $region134: #{tpu_custom_call.1} parent=1 // pred_check
      _
    $region135: #{tpu_custom_call.1} parent=1 // pred_check_branch
      %1407 = sbr.rel (0) target = $region137
    $region136: #{tpu_custom_call.1} parent=1 // pred_region
      %1409 = vsyncadd [#allocation27], 0
      %s1411 = sshll.u32 [#allocation28], 4
      %s1412 = int_to_ptr.vmem [resolvable:$true] %s1411
      %s1413 = sshll.u32 %s21, 4
      %s1414 = int_to_ptr.hbm [resolvable:$true] %s1413
      %1416 = dma.vmem_to_hbm [thread:$0]  %s1412, 32, %s1414, [#allocation27]
    $region137: #{tpu_custom_call.1} parent=1 // pred_fallthru
      _
    // Predicated region
    $region138: #{tpu_custom_call.1} parent=1 // pred_check
      _
    $region139: #{tpu_custom_call.1} parent=1 // pred_check_branch
      %1418 = sbr.rel (0) target = $region141
    $region140: #{tpu_custom_call.1} parent=1 // pred_region
      %1420 = vsyncadd [#allocation30], 0
      %s1422 = sshll.u32 [#allocation29], 4
      %s1423 = int_to_ptr.vmem [resolvable:$true] %s1422
      %s1424 = sshll.u32 %s22, 4
      %s1425 = int_to_ptr.hbm [resolvable:$true] %s1424
      %1427 = dma.vmem_to_hbm [thread:$0]  %s1423, 32, %s1425, [#allocation30]
    $region141: #{tpu_custom_call.1} parent=1 // pred_fallthru
      _
    // Predicated region
    $region142: #{tpu_custom_call.1} parent=1 // pred_check
      _
    $region143: #{tpu_custom_call.1} parent=1 // pred_check_branch
      %1429 = sbr.rel (0) target = $region145
    $region144: #{tpu_custom_call.1} parent=1 // pred_region
      %1431 = dma.done [#allocation4], 256
    $region145: #{tpu_custom_call.1} parent=1 // pred_fallthru
      _
    // Predicated region
    $region146: #{tpu_custom_call.1} parent=1 // pred_check
      _
    $region147: #{tpu_custom_call.1} parent=1 // pred_check_branch
      %1433 = sbr.rel (0) target = $region149
    $region148: #{tpu_custom_call.1} parent=1 // pred_region
      %1435 = dma.done [#allocation24], 256
    $region149: #{tpu_custom_call.1} parent=1 // pred_fallthru
      _
    // Predicated region
    $region150: #{tpu_custom_call.1} parent=1 // pred_check
      _
    $region151: #{tpu_custom_call.1} parent=1 // pred_check_branch
      %1437 = sbr.rel (0) target = $region153
    $region152: #{tpu_custom_call.1} parent=1 // pred_region
      %1439 = dma.done [#allocation24], 32
    $region153: #{tpu_custom_call.1} parent=1 // pred_fallthru
      _
    // Predicated region
    $region154: #{tpu_custom_call.1} parent=1 // pred_check
      _
    $region155: #{tpu_custom_call.1} parent=1 // pred_check_branch
      %1441 = sbr.rel (0) target = $region157
    $region156: #{tpu_custom_call.1} parent=1 // pred_region
      %1443 = dma.done [#allocation27], 32
    $region157: #{tpu_custom_call.1} parent=1 // pred_fallthru
      _
    // Predicated region
    $region158: #{tpu_custom_call.1} parent=1 // pred_check
      _
    $region159: #{tpu_custom_call.1} parent=1 // pred_check_branch
      %1445 = sbr.rel (0) target = $region161
    $region160: #{tpu_custom_call.1} parent=1 // pred_region
      %1447 = dma.done [#allocation27], 32
    $region161: #{tpu_custom_call.1} parent=1 // pred_fallthru
      _
    // Predicated region
    $region162: #{tpu_custom_call.1} parent=1 // pred_check
      _
    $region163: #{tpu_custom_call.1} parent=1 // pred_check_branch
      %1449 = sbr.rel (0) target = $region165
    $region164: #{tpu_custom_call.1} parent=1 // pred_region
      %1451 = dma.done [#allocation30], 32
    $region165: #{tpu_custom_call.1} parent=1 // pred_fallthru
      _
    %1452 = vsyncpa [#allocation3], 1
    %1453 = vsyncpa [#allocation6], 1
    %1454 = vsyncpa [#allocation9], 1
    %1455 = vsyncpa [#allocation12], 1
    %1456 = vsyncpa [#allocation15], 1
    %1457 = vsyncpa [#allocation18], 1
    %1458 = vsyncpa [#allocation21], 1
    %1459 = vsyncpa [#allocation4], 1
    %1460 = vsyncpa [#allocation24], 1
    %1461 = vsyncpa [#allocation27], 1
    %1462 = vsyncpa [#allocation30], 1

</llo_original>
